<compile_context>
chip_gen: v5e
topology: v5e:2x2
jax: 0.10.0
libtpu: 0.0.40
codegen_flags: <defaults>
</compile_context>

<pallas_src>
import jax
import jax.numpy as jnp
import numpy as np
from jax import lax
from jax.experimental import pallas as pl
from jax.experimental.pallas import tpu as pltpu


KH = KW = 5          # conv kernel size (both convs)
C1 = 6               # conv1 output channels
C2 = 16              # conv2 output channels
FC1, FC2 = 120, 84   # fc hidden widths
LANE = 128
BATCH_TILE = 8       # f32 sublane granule


def _lenet5_kernel(x_ref, a1_ref, b1_ref, a2_ref, b2_ref,
                   f1_ref, fb1_ref, f2_ref, fb2_ref, f3_ref, fb3_ref,
                   o_ref):
    H1, BT, WC1 = x_ref.shape              # (28, 8, 28*Cin)
    OH1 = H1 - KH + 1                      # 24
    N1 = a1_ref.shape[-1]                  # OW1*C1 = 144
    PH1 = OH1 // 2                         # 12
    OH2 = PH1 - KH + 1                     # 8
    K2 = a2_ref.shape[-2]                  # 138 = N1 - C1
    N2 = a2_ref.shape[-1]                  # OW2*C2 = 128
    PH2 = OH2 // 2                         # 4

    x0 = x_ref[...]                        # (28, 8, W*Cin)

    # ---- conv1: KH banded MXU matmuls contracting over the (W*Cin) lane axis.
    acc1 = jnp.zeros((OH1 * BT, N1), jnp.float32)
    for kh in range(KH):
        lhs = x0[kh:kh + OH1].reshape(OH1 * BT, WC1)     # leading-dim view
        acc1 = acc1 + jnp.dot(lhs, a1_ref[kh],
                              preferred_element_type=jnp.float32)
    z1 = jnp.maximum(acc1 + b1_ref[...], 0.0)            # (192, 144) bias+ReLU

    # ---- 2x2 max-pool #1.  Rows (oh): leading-dim reshape + max.
    # Cols (ow): shifted lane max; valid results land at lanes 2*C1*pw + ci,
    # the garbage lanes are killed by zero rows in conv2's banded matrix.
    t = z1.reshape(PH1, 2, BT, N1)
    t = jnp.maximum(t[:, 0], t[:, 1])                    # (12, 8, 144)
    u = jnp.maximum(t[..., :N1 - C1], t[..., C1:])       # (12, 8, 138)

    # ---- conv2: same banded-matmul trick on the sparse lane layout.
    acc2 = jnp.zeros((OH2 * BT, N2), jnp.float32)
    for kh in range(KH):
        lhs = u[kh:kh + OH2].reshape(OH2 * BT, K2)
        acc2 = acc2 + jnp.dot(lhs, a2_ref[kh],
                              preferred_element_type=jnp.float32)
    z2 = jnp.maximum(acc2 + b2_ref[...], 0.0)            # (64, 128)

    # ---- 2x2 max-pool #2 (same scheme; valid lanes at 2*C2*pw + co).
    v = z2.reshape(PH2, 2, BT, N2)
    v = jnp.maximum(v[:, 0], v[:, 1])                    # (4, 8, 128)
    q = jnp.maximum(v[..., :N2 - C2], v[..., C2:])       # (4, 8, 112)

    # ---- flatten: stack the PH2 pooled rows along lanes -> (8, PH2*112).
    # fc1's weight rows are pre-permuted / zero-padded to this exact layout.
    flat = jnp.concatenate([q[h] for h in range(PH2)], axis=-1)

    # ---- fc1 -> relu -> fc2 -> relu -> fc3 (all widths padded to 128 lanes).
    h1 = jnp.maximum(
        jnp.dot(flat, f1_ref[...], preferred_element_type=jnp.float32)
        + fb1_ref[...], 0.0)
    h2 = jnp.maximum(
        jnp.dot(h1, f2_ref[...], preferred_element_type=jnp.float32)
        + fb2_ref[...], 0.0)
    out = jnp.dot(h2, f3_ref[...], preferred_element_type=jnp.float32) + fb3_ref[...]
    o_ref[...] = out.astype(o_ref.dtype)


def convert_params(torch_params, input_channels, out_channels, T, H, W):
    """Convert PyTorch-layout LeNet5 params into the fused kernel's operands."""
    cin = input_channels
    OH1, OW1 = H - KH + 1, W - KW + 1
    PH1, PW1 = OH1 // 2, OW1 // 2
    OH2, OW2 = PH1 - KH + 1, PW1 - KW + 1
    PH2, PW2 = OH2 // 2, OW2 // 2
    assert OH1 % 2 == 0 and OW1 % 2 == 0 and OH2 % 2 == 0 and OW2 % 2 == 0
    assert PH2 == T and PW2 == T, "input spatial size inconsistent with T"
    assert out_channels <= LANE and FC1 <= LANE and FC2 <= LANE

    w1 = np.asarray(torch_params["conv1_w"], np.float32)   # (C1, Cin, 5, 5)
    b1 = np.asarray(torch_params["conv1_b"], np.float32)
    w2 = np.asarray(torch_params["conv2_w"], np.float32)   # (C2, C1, 5, 5)
    b2 = np.asarray(torch_params["conv2_b"], np.float32)
    fw1 = np.asarray(torch_params["fc1_w"], np.float32)    # (120, 16*T*T)
    fb1 = np.asarray(torch_params["fc1_b"], np.float32)
    fw2 = np.asarray(torch_params["fc2_w"], np.float32)    # (84, 120)
    fb2 = np.asarray(torch_params["fc2_b"], np.float32)
    fw3 = np.asarray(torch_params["fc3_w"], np.float32)    # (out, 84)
    fb3 = np.asarray(torch_params["fc3_b"], np.float32)

    # conv1 banded matrices: A1[kh][w*cin+ci, ow*C1+co] = w1[co, ci, kh, w-ow].
    A1 = np.zeros((KH, W * cin, OW1 * C1), np.float32)
    for kh in range(KH):
        for ow in range(OW1):
            for kw in range(KW):
                wp = ow + kw
                A1[kh, wp * cin:(wp + 1) * cin,
                   ow * C1:(ow + 1) * C1] = w1[:, :, kh, kw].T
    b1t = np.tile(b1, OW1)[None, :]                         # (1, OW1*C1)

    # conv2: its input's valid lanes sit at L = 2*C1*w2 + ci (post-pool).
    K2 = 2 * C1 * (PW1 - 1) + C1                            # 138
    A2 = np.zeros((KH, K2, OW2 * C2), np.float32)
    for kh in range(KH):
        for ow in range(OW2):
            for kw in range(KW):
                wp = ow + kw
                A2[kh, 2 * C1 * wp:2 * C1 * wp + C1,
                   ow * C2:(ow + 1) * C2] = w2[:, :, kh, kw].T
    b2t = np.tile(b2, OW2)[None, :]                         # (1, OW2*C2)

    # fc1: kernel-side flattened lane F = h*(OW2*C2 - C2) + 2*C2*w + co
    # corresponds to PyTorch flatten index co*T*T + h*T + w.
    FW = OW2 * C2 - C2                                      # 112
    F1 = np.zeros((PH2 * FW, LANE), np.float32)
    for h in range(PH2):
        for w_ in range(PW2):
            for co in range(C2):
                F1[h * FW + 2 * C2 * w_ + co, :FC1] = fw1[:, co * T * T + h * T + w_]
    fb1p = np.zeros((1, LANE), np.float32)
    fb1p[0, :FC1] = fb1

    F2 = np.zeros((LANE, LANE), np.float32)
    F2[:FC1, :FC2] = fw2.T
    fb2p = np.zeros((1, LANE), np.float32)
    fb2p[0, :FC2] = fb2

    F3 = np.zeros((LANE, LANE), np.float32)
    F3[:FC2, :out_channels] = fw3.T
    fb3p = np.zeros((1, LANE), np.float32)
    fb3p[0, :out_channels] = fb3

    host = dict(A1=A1, b1t=b1t, A2=A2, b2t=b2t,
                F1=F1, fb1=fb1p, F2=F2, fb2=fb2p, F3=F3, fb3=fb3p)
    return {k: jnp.asarray(v) for k, v in host.items()}


def _const_spec(arr):
    zeros = (0,) * arr.ndim
    return pl.BlockSpec(arr.shape, lambda i: zeros)


def lenet5_forward(x_nchw, kernel_params, out_channels):
    B, cin, H, W = x_nchw.shape
    Bp = ((B + BATCH_TILE - 1) // BATCH_TILE) * BATCH_TILE
    nbt = Bp // BATCH_TILE
    kp = kernel_params

    x = x_nchw.astype(jnp.float32)
    if Bp != B:
        x = jnp.pad(x, ((0, Bp - B), (0, 0), (0, 0), (0, 0)))
    # NCHW -> (H, batch, W*Cin): width*channels on lanes, batch on sublanes.
    xl = jnp.transpose(x, (2, 0, 3, 1)).reshape(H, Bp, W * cin)

    out = pl.pallas_call(
        _lenet5_kernel,
        out_shape=jax.ShapeDtypeStruct((Bp, LANE), jnp.float32),
        grid=(nbt,),
        in_specs=[
            pl.BlockSpec((H, BATCH_TILE, W * cin), lambda i: (0, i, 0)),
            _const_spec(kp["A1"]), _const_spec(kp["b1t"]),
            _const_spec(kp["A2"]), _const_spec(kp["b2t"]),
            _const_spec(kp["F1"]), _const_spec(kp["fb1"]),
            _const_spec(kp["F2"]), _const_spec(kp["fb2"]),
            _const_spec(kp["F3"]), _const_spec(kp["fb3"]),
        ],
        out_specs=pl.BlockSpec((BATCH_TILE, LANE), lambda i: (i, 0)),
        compiler_params=pltpu.CompilerParams(
            dimension_semantics=("parallel",)),
    )(xl, kp["A1"], kp["b1t"], kp["A2"], kp["b2t"],
      kp["F1"], kp["fb1"], kp["F2"], kp["fb2"], kp["F3"], kp["fb3"])

    return out[:B, :out_channels]


def lenet5_reference(x, p):
    """Pure-JAX reference matching the PyTorch module."""
    dn = ("NCHW", "OIHW", "NCHW")
    hi = lax.Precision.HIGHEST
    y = lax.conv_general_dilated(x, p["conv1_w"], (1, 1), "VALID",
                                 dimension_numbers=dn, precision=hi)
    y = jnp.maximum(y + p["conv1_b"][None, :, None, None], 0.0)
    y = lax.reduce_window(y, -jnp.inf, lax.max, (1, 1, 2, 2), (1, 1, 2, 2), "VALID")
    y = lax.conv_general_dilated(y, p["conv2_w"], (1, 1), "VALID",
                                 dimension_numbers=dn, precision=hi)
    y = jnp.maximum(y + p["conv2_b"][None, :, None, None], 0.0)
    y = lax.reduce_window(y, -jnp.inf, lax.max, (1, 1, 2, 2), (1, 1, 2, 2), "VALID")
    y = y.reshape(y.shape[0], -1)                       # torch x.view(-1, 16*T*T)
    y = jnp.maximum(jnp.dot(y, p["fc1_w"].T, precision=hi) + p["fc1_b"], 0.0)
    y = jnp.maximum(jnp.dot(y, p["fc2_w"].T, precision=hi) + p["fc2_b"], 0.0)
    return jnp.dot(y, p["fc3_w"].T, precision=hi) + p["fc3_b"]


def init_torch_params(key, input_channels, out_channels, T):
    ks = jax.random.split(key, 10)

    def init(k, shape, fan_in):
        return (jax.random.normal(k, shape) / np.sqrt(fan_in)).astype(jnp.float32)

    return {
        "conv1_w": init(ks[0], (C1, input_channels, KH, KW), KH * KW * input_channels),
        "conv1_b": init(ks[1], (C1,), KH * KW * input_channels),
        "conv2_w": init(ks[2], (C2, C1, KH, KW), KH * KW * C1),
        "conv2_b": init(ks[3], (C2,), KH * KW * C1),
        "fc1_w": init(ks[4], (FC1, C2 * T * T), C2 * T * T),
        "fc1_b": init(ks[5], (FC1,), C2 * T * T),
        "fc2_w": init(ks[6], (FC2, FC1), FC1),
        "fc2_b": init(ks[7], (FC2,), FC1),
        "fc3_w": init(ks[8], (out_channels, FC2), FC2),
        "fc3_b": init(ks[9], (out_channels,), FC2),
    }


if __name__ == "__main__":
    # LeNet5 geometry: T=4 implies a 28x28 input (28-5+1=24 -> 12 -> 8 -> 4).
    batch, input_channels, out_channels, T = 2, 1, 10, 4
    H = W = 4 * T + 12                                   # 28

    key = jax.random.PRNGKey(0)
    k_x, k_p = jax.random.split(key)
    x = jax.random.normal(k_x, (batch, input_channels, H, W), dtype=jnp.float32)
    torch_params = init_torch_params(k_p, input_channels, out_channels, T)

    kernel_params = convert_params(torch_params, input_channels, out_channels, T, H, W)
    out = jax.block_until_ready(lenet5_forward(x, kernel_params, out_channels))
    assert out.shape == (batch, out_channels), out.shape

    ref = jax.block_until_ready(lenet5_reference(x, torch_params))
    np.testing.assert_allclose(np.asarray(out), np.asarray(ref), rtol=2e-2, atol=2e-2)

    print("KERNEL_OK")
</pallas_src>

<mosaic_0001>
module attributes {stable_mosaic.version = 11 : i64} {
  func.func @_lenet5_kernel(%arg0: i32, %arg1: memref<28x8x28xf32, #tpu.memory_space<vmem>>, %arg2: memref<5x28x144xf32, #tpu.memory_space<vmem>>, %arg3: memref<1x144xf32, #tpu.memory_space<vmem>>, %arg4: memref<5x138x128xf32, #tpu.memory_space<vmem>>, %arg5: memref<1x128xf32, #tpu.memory_space<vmem>>, %arg6: memref<448x128xf32, #tpu.memory_space<vmem>>, %arg7: memref<1x128xf32, #tpu.memory_space<vmem>>, %arg8: memref<128x128xf32, #tpu.memory_space<vmem>>, %arg9: memref<1x128xf32, #tpu.memory_space<vmem>>, %arg10: memref<128x128xf32, #tpu.memory_space<vmem>>, %arg11: memref<1x128xf32, #tpu.memory_space<vmem>>, %arg12: memref<8x128xf32, #tpu.memory_space<vmem>>) attributes {dimension_semantics = [#tpu.dimension_semantics<parallel>], iteration_bounds = array<i64: 1>, scalar_prefetch = 0 : i64, scratch_operands = 0 : i64, tpu.core_type = #tpu.core_type<tc>, window_params = [{transform_indices = @transform_0, window_bounds = array<i64: 28, 8, 28>}, {pipeline_mode = #tpu.pipeline_mode<synchronous>, transform_indices = @transform_1, window_bounds = array<i64: 5, 28, 144>}, {pipeline_mode = #tpu.pipeline_mode<synchronous>, transform_indices = @transform_2, window_bounds = array<i64: 1, 144>}, {pipeline_mode = #tpu.pipeline_mode<synchronous>, transform_indices = @transform_3, window_bounds = array<i64: 5, 138, 128>}, {pipeline_mode = #tpu.pipeline_mode<synchronous>, transform_indices = @transform_4, window_bounds = array<i64: 1, 128>}, {pipeline_mode = #tpu.pipeline_mode<synchronous>, transform_indices = @transform_5, window_bounds = array<i64: 448, 128>}, {pipeline_mode = #tpu.pipeline_mode<synchronous>, transform_indices = @transform_6, window_bounds = array<i64: 1, 128>}, {pipeline_mode = #tpu.pipeline_mode<synchronous>, transform_indices = @transform_7, window_bounds = array<i64: 128, 128>}, {pipeline_mode = #tpu.pipeline_mode<synchronous>, transform_indices = @transform_8, window_bounds = array<i64: 1, 128>}, {pipeline_mode = #tpu.pipeline_mode<synchronous>, transform_indices = @transform_9, window_bounds = array<i64: 128, 128>}, {pipeline_mode = #tpu.pipeline_mode<synchronous>, transform_indices = @transform_10, window_bounds = array<i64: 1, 128>}, {transform_indices = @transform_11, window_bounds = array<i64: 8, 128>}]} {
    %c0 = arith.constant 0 : index
    %c0_0 = arith.constant 0 : index
    %c0_1 = arith.constant 0 : index
    %0 = vector.load %arg1[%c0, %c0_0, %c0_1] : memref<28x8x28xf32, #tpu.memory_space<vmem>>, vector<28x8x28xf32>
    %cst = arith.constant 0.000000e+00 : f32
    %1 = vector.broadcast %cst : f32 to vector<192x144xf32>
    %2 = vector.extract_strided_slice %0 {offsets = [0, 0, 0], sizes = [24, 8, 28], strides = [1, 1, 1]} : vector<28x8x28xf32> to vector<24x8x28xf32>
    %3 = vector.shape_cast %2 : vector<24x8x28xf32> to vector<192x28xf32>
    %c0_2 = arith.constant 0 : index
    %c0_3 = arith.constant 0 : index
    %c0_4 = arith.constant 0 : index
    %4 = vector.load %arg2[%c0_2, %c0_3, %c0_4] : memref<5x28x144xf32, #tpu.memory_space<vmem>>, vector<1x28x144xf32>
    %5 = vector.shape_cast %4 : vector<1x28x144xf32> to vector<28x144xf32>
    %cst_5 = arith.constant dense<0.000000e+00> : vector<192x144xf32>
    %6 = tpu.matmul %3, %5, %cst_5 {dimension_numbers = #tpu.dot_dimension_numbers<[1], [0], [0], [1], [0, 0, 1, 1], [], []>} : vector<192x28xf32>, vector<28x144xf32>, vector<192x144xf32> -> vector<192x144xf32>
    %7 = arith.addf %1, %6 : vector<192x144xf32>
    %8 = vector.extract_strided_slice %0 {offsets = [1, 0, 0], sizes = [24, 8, 28], strides = [1, 1, 1]} : vector<28x8x28xf32> to vector<24x8x28xf32>
    %9 = vector.shape_cast %8 : vector<24x8x28xf32> to vector<192x28xf32>
    %c1 = arith.constant 1 : index
    %c0_6 = arith.constant 0 : index
    %c0_7 = arith.constant 0 : index
    %10 = vector.load %arg2[%c1, %c0_6, %c0_7] : memref<5x28x144xf32, #tpu.memory_space<vmem>>, vector<1x28x144xf32>
    %11 = vector.shape_cast %10 : vector<1x28x144xf32> to vector<28x144xf32>
    %cst_8 = arith.constant dense<0.000000e+00> : vector<192x144xf32>
    %12 = tpu.matmul %9, %11, %cst_8 {dimension_numbers = #tpu.dot_dimension_numbers<[1], [0], [0], [1], [0, 0, 1, 1], [], []>} : vector<192x28xf32>, vector<28x144xf32>, vector<192x144xf32> -> vector<192x144xf32>
    %13 = arith.addf %7, %12 : vector<192x144xf32>
    %14 = vector.extract_strided_slice %0 {offsets = [2, 0, 0], sizes = [24, 8, 28], strides = [1, 1, 1]} : vector<28x8x28xf32> to vector<24x8x28xf32>
    %15 = vector.shape_cast %14 : vector<24x8x28xf32> to vector<192x28xf32>
    %c2 = arith.constant 2 : index
    %c0_9 = arith.constant 0 : index
    %c0_10 = arith.constant 0 : index
    %16 = vector.load %arg2[%c2, %c0_9, %c0_10] : memref<5x28x144xf32, #tpu.memory_space<vmem>>, vector<1x28x144xf32>
    %17 = vector.shape_cast %16 : vector<1x28x144xf32> to vector<28x144xf32>
    %cst_11 = arith.constant dense<0.000000e+00> : vector<192x144xf32>
    %18 = tpu.matmul %15, %17, %cst_11 {dimension_numbers = #tpu.dot_dimension_numbers<[1], [0], [0], [1], [0, 0, 1, 1], [], []>} : vector<192x28xf32>, vector<28x144xf32>, vector<192x144xf32> -> vector<192x144xf32>
    %19 = arith.addf %13, %18 : vector<192x144xf32>
    %20 = vector.extract_strided_slice %0 {offsets = [3, 0, 0], sizes = [24, 8, 28], strides = [1, 1, 1]} : vector<28x8x28xf32> to vector<24x8x28xf32>
    %21 = vector.shape_cast %20 : vector<24x8x28xf32> to vector<192x28xf32>
    %c3 = arith.constant 3 : index
    %c0_12 = arith.constant 0 : index
    %c0_13 = arith.constant 0 : index
    %22 = vector.load %arg2[%c3, %c0_12, %c0_13] : memref<5x28x144xf32, #tpu.memory_space<vmem>>, vector<1x28x144xf32>
    %23 = vector.shape_cast %22 : vector<1x28x144xf32> to vector<28x144xf32>
    %cst_14 = arith.constant dense<0.000000e+00> : vector<192x144xf32>
    %24 = tpu.matmul %21, %23, %cst_14 {dimension_numbers = #tpu.dot_dimension_numbers<[1], [0], [0], [1], [0, 0, 1, 1], [], []>} : vector<192x28xf32>, vector<28x144xf32>, vector<192x144xf32> -> vector<192x144xf32>
    %25 = arith.addf %19, %24 : vector<192x144xf32>
    %26 = vector.extract_strided_slice %0 {offsets = [4, 0, 0], sizes = [24, 8, 28], strides = [1, 1, 1]} : vector<28x8x28xf32> to vector<24x8x28xf32>
    %27 = vector.shape_cast %26 : vector<24x8x28xf32> to vector<192x28xf32>
    %c4 = arith.constant 4 : index
    %c0_15 = arith.constant 0 : index
    %c0_16 = arith.constant 0 : index
    %28 = vector.load %arg2[%c4, %c0_15, %c0_16] : memref<5x28x144xf32, #tpu.memory_space<vmem>>, vector<1x28x144xf32>
    %29 = vector.shape_cast %28 : vector<1x28x144xf32> to vector<28x144xf32>
    %cst_17 = arith.constant dense<0.000000e+00> : vector<192x144xf32>
    %30 = tpu.matmul %27, %29, %cst_17 {dimension_numbers = #tpu.dot_dimension_numbers<[1], [0], [0], [1], [0, 0, 1, 1], [], []>} : vector<192x28xf32>, vector<28x144xf32>, vector<192x144xf32> -> vector<192x144xf32>
    %31 = arith.addf %25, %30 : vector<192x144xf32>
    %c0_18 = arith.constant 0 : index
    %c0_19 = arith.constant 0 : index
    %32 = vector.load %arg3[%c0_18, %c0_19] : memref<1x144xf32, #tpu.memory_space<vmem>>, vector<1x144xf32>
    %33 = vector.broadcast %32 : vector<1x144xf32> to vector<192x144xf32>
    %34 = arith.addf %31, %33 : vector<192x144xf32>
    %cst_20 = arith.constant 0.000000e+00 : f32
    %35 = vector.broadcast %cst_20 : f32 to vector<192x144xf32>
    %36 = arith.maximumf %34, %35 : vector<192x144xf32>
    %37 = vector.shape_cast %36 : vector<192x144xf32> to vector<12x2x8x144xf32>
    %38 = vector.extract_strided_slice %37 {offsets = [0, 0, 0, 0], sizes = [12, 1, 8, 144], strides = [1, 1, 1, 1]} : vector<12x2x8x144xf32> to vector<12x1x8x144xf32>
    %39 = vector.shape_cast %38 : vector<12x1x8x144xf32> to vector<12x8x144xf32>
    %40 = vector.extract_strided_slice %37 {offsets = [0, 1, 0, 0], sizes = [12, 1, 8, 144], strides = [1, 1, 1, 1]} : vector<12x2x8x144xf32> to vector<12x1x8x144xf32>
    %41 = vector.shape_cast %40 : vector<12x1x8x144xf32> to vector<12x8x144xf32>
    %42 = arith.maximumf %39, %41 : vector<12x8x144xf32>
    %43 = vector.extract_strided_slice %42 {offsets = [0, 0, 0], sizes = [12, 8, 138], strides = [1, 1, 1]} : vector<12x8x144xf32> to vector<12x8x138xf32>
    %44 = vector.extract_strided_slice %42 {offsets = [0, 0, 6], sizes = [12, 8, 138], strides = [1, 1, 1]} : vector<12x8x144xf32> to vector<12x8x138xf32>
    %45 = arith.maximumf %43, %44 : vector<12x8x138xf32>
    %cst_21 = arith.constant 0.000000e+00 : f32
    %46 = vector.broadcast %cst_21 : f32 to vector<64x128xf32>
    %47 = vector.extract_strided_slice %45 {offsets = [0, 0, 0], sizes = [8, 8, 138], strides = [1, 1, 1]} : vector<12x8x138xf32> to vector<8x8x138xf32>
    %48 = vector.shape_cast %47 : vector<8x8x138xf32> to vector<64x138xf32>
    %c0_22 = arith.constant 0 : index
    %c0_23 = arith.constant 0 : index
    %c0_24 = arith.constant 0 : index
    %49 = vector.load %arg4[%c0_22, %c0_23, %c0_24] : memref<5x138x128xf32, #tpu.memory_space<vmem>>, vector<1x138x128xf32>
    %50 = vector.shape_cast %49 : vector<1x138x128xf32> to vector<138x128xf32>
    %cst_25 = arith.constant dense<0.000000e+00> : vector<64x128xf32>
    %51 = tpu.matmul %48, %50, %cst_25 {dimension_numbers = #tpu.dot_dimension_numbers<[1], [0], [0], [1], [0, 0, 1, 1], [], []>} : vector<64x138xf32>, vector<138x128xf32>, vector<64x128xf32> -> vector<64x128xf32>
    %52 = arith.addf %46, %51 : vector<64x128xf32>
    %53 = vector.extract_strided_slice %45 {offsets = [1, 0, 0], sizes = [8, 8, 138], strides = [1, 1, 1]} : vector<12x8x138xf32> to vector<8x8x138xf32>
    %54 = vector.shape_cast %53 : vector<8x8x138xf32> to vector<64x138xf32>
    %c1_26 = arith.constant 1 : index
    %c0_27 = arith.constant 0 : index
    %c0_28 = arith.constant 0 : index
    %55 = vector.load %arg4[%c1_26, %c0_27, %c0_28] : memref<5x138x128xf32, #tpu.memory_space<vmem>>, vector<1x138x128xf32>
    %56 = vector.shape_cast %55 : vector<1x138x128xf32> to vector<138x128xf32>
    %cst_29 = arith.constant dense<0.000000e+00> : vector<64x128xf32>
    %57 = tpu.matmul %54, %56, %cst_29 {dimension_numbers = #tpu.dot_dimension_numbers<[1], [0], [0], [1], [0, 0, 1, 1], [], []>} : vector<64x138xf32>, vector<138x128xf32>, vector<64x128xf32> -> vector<64x128xf32>
    %58 = arith.addf %52, %57 : vector<64x128xf32>
    %59 = vector.extract_strided_slice %45 {offsets = [2, 0, 0], sizes = [8, 8, 138], strides = [1, 1, 1]} : vector<12x8x138xf32> to vector<8x8x138xf32>
    %60 = vector.shape_cast %59 : vector<8x8x138xf32> to vector<64x138xf32>
    %c2_30 = arith.constant 2 : index
    %c0_31 = arith.constant 0 : index
    %c0_32 = arith.constant 0 : index
    %61 = vector.load %arg4[%c2_30, %c0_31, %c0_32] : memref<5x138x128xf32, #tpu.memory_space<vmem>>, vector<1x138x128xf32>
    %62 = vector.shape_cast %61 : vector<1x138x128xf32> to vector<138x128xf32>
    %cst_33 = arith.constant dense<0.000000e+00> : vector<64x128xf32>
    %63 = tpu.matmul %60, %62, %cst_33 {dimension_numbers = #tpu.dot_dimension_numbers<[1], [0], [0], [1], [0, 0, 1, 1], [], []>} : vector<64x138xf32>, vector<138x128xf32>, vector<64x128xf32> -> vector<64x128xf32>
    %64 = arith.addf %58, %63 : vector<64x128xf32>
    %65 = vector.extract_strided_slice %45 {offsets = [3, 0, 0], sizes = [8, 8, 138], strides = [1, 1, 1]} : vector<12x8x138xf32> to vector<8x8x138xf32>
    %66 = vector.shape_cast %65 : vector<8x8x138xf32> to vector<64x138xf32>
    %c3_34 = arith.constant 3 : index
    %c0_35 = arith.constant 0 : index
    %c0_36 = arith.constant 0 : index
    %67 = vector.load %arg4[%c3_34, %c0_35, %c0_36] : memref<5x138x128xf32, #tpu.memory_space<vmem>>, vector<1x138x128xf32>
    %68 = vector.shape_cast %67 : vector<1x138x128xf32> to vector<138x128xf32>
    %cst_37 = arith.constant dense<0.000000e+00> : vector<64x128xf32>
    %69 = tpu.matmul %66, %68, %cst_37 {dimension_numbers = #tpu.dot_dimension_numbers<[1], [0], [0], [1], [0, 0, 1, 1], [], []>} : vector<64x138xf32>, vector<138x128xf32>, vector<64x128xf32> -> vector<64x128xf32>
    %70 = arith.addf %64, %69 : vector<64x128xf32>
    %71 = vector.extract_strided_slice %45 {offsets = [4, 0, 0], sizes = [8, 8, 138], strides = [1, 1, 1]} : vector<12x8x138xf32> to vector<8x8x138xf32>
    %72 = vector.shape_cast %71 : vector<8x8x138xf32> to vector<64x138xf32>
    %c4_38 = arith.constant 4 : index
    %c0_39 = arith.constant 0 : index
    %c0_40 = arith.constant 0 : index
    %73 = vector.load %arg4[%c4_38, %c0_39, %c0_40] : memref<5x138x128xf32, #tpu.memory_space<vmem>>, vector<1x138x128xf32>
    %74 = vector.shape_cast %73 : vector<1x138x128xf32> to vector<138x128xf32>
    %cst_41 = arith.constant dense<0.000000e+00> : vector<64x128xf32>
    %75 = tpu.matmul %72, %74, %cst_41 {dimension_numbers = #tpu.dot_dimension_numbers<[1], [0], [0], [1], [0, 0, 1, 1], [], []>} : vector<64x138xf32>, vector<138x128xf32>, vector<64x128xf32> -> vector<64x128xf32>
    %76 = arith.addf %70, %75 : vector<64x128xf32>
    %c0_42 = arith.constant 0 : index
    %c0_43 = arith.constant 0 : index
    %77 = vector.load %arg5[%c0_42, %c0_43] : memref<1x128xf32, #tpu.memory_space<vmem>>, vector<1x128xf32>
    %78 = vector.broadcast %77 : vector<1x128xf32> to vector<64x128xf32>
    %79 = arith.addf %76, %78 : vector<64x128xf32>
    %cst_44 = arith.constant 0.000000e+00 : f32
    %80 = vector.broadcast %cst_44 : f32 to vector<64x128xf32>
    %81 = arith.maximumf %79, %80 : vector<64x128xf32>
    %82 = vector.shape_cast %81 : vector<64x128xf32> to vector<4x2x8x128xf32>
    %83 = vector.extract_strided_slice %82 {offsets = [0, 0, 0, 0], sizes = [4, 1, 8, 128], strides = [1, 1, 1, 1]} : vector<4x2x8x128xf32> to vector<4x1x8x128xf32>
    %84 = vector.shape_cast %83 : vector<4x1x8x128xf32> to vector<4x8x128xf32>
    %85 = vector.extract_strided_slice %82 {offsets = [0, 1, 0, 0], sizes = [4, 1, 8, 128], strides = [1, 1, 1, 1]} : vector<4x2x8x128xf32> to vector<4x1x8x128xf32>
    %86 = vector.shape_cast %85 : vector<4x1x8x128xf32> to vector<4x8x128xf32>
    %87 = arith.maximumf %84, %86 : vector<4x8x128xf32>
    %88 = vector.extract_strided_slice %87 {offsets = [0, 0, 0], sizes = [4, 8, 112], strides = [1, 1, 1]} : vector<4x8x128xf32> to vector<4x8x112xf32>
    %89 = vector.extract_strided_slice %87 {offsets = [0, 0, 16], sizes = [4, 8, 112], strides = [1, 1, 1]} : vector<4x8x128xf32> to vector<4x8x112xf32>
    %90 = arith.maximumf %88, %89 : vector<4x8x112xf32>
    %91 = vector.extract_strided_slice %90 {offsets = [0, 0, 0], sizes = [1, 8, 112], strides = [1, 1, 1]} : vector<4x8x112xf32> to vector<1x8x112xf32>
    %92 = vector.shape_cast %91 : vector<1x8x112xf32> to vector<8x112xf32>
    %93 = vector.extract_strided_slice %90 {offsets = [1, 0, 0], sizes = [1, 8, 112], strides = [1, 1, 1]} : vector<4x8x112xf32> to vector<1x8x112xf32>
    %94 = vector.shape_cast %93 : vector<1x8x112xf32> to vector<8x112xf32>
    %95 = vector.extract_strided_slice %90 {offsets = [2, 0, 0], sizes = [1, 8, 112], strides = [1, 1, 1]} : vector<4x8x112xf32> to vector<1x8x112xf32>
    %96 = vector.shape_cast %95 : vector<1x8x112xf32> to vector<8x112xf32>
    %97 = vector.extract_strided_slice %90 {offsets = [3, 0, 0], sizes = [1, 8, 112], strides = [1, 1, 1]} : vector<4x8x112xf32> to vector<1x8x112xf32>
    %98 = vector.shape_cast %97 : vector<1x8x112xf32> to vector<8x112xf32>
    %99 = tpu.concatenate %92, %94, %96, %98 in 1 : vector<8x112xf32>, vector<8x112xf32>, vector<8x112xf32>, vector<8x112xf32> -> vector<8x448xf32>
    %c0_45 = arith.constant 0 : index
    %c0_46 = arith.constant 0 : index
    %100 = vector.load %arg6[%c0_45, %c0_46] : memref<448x128xf32, #tpu.memory_space<vmem>>, vector<448x128xf32>
    %cst_47 = arith.constant dense<0.000000e+00> : vector<8x128xf32>
    %101 = tpu.matmul %99, %100, %cst_47 {dimension_numbers = #tpu.dot_dimension_numbers<[1], [0], [0], [1], [0, 0, 1, 1], [], []>} : vector<8x448xf32>, vector<448x128xf32>, vector<8x128xf32> -> vector<8x128xf32>
    %c0_48 = arith.constant 0 : index
    %c0_49 = arith.constant 0 : index
    %102 = vector.load %arg7[%c0_48, %c0_49] : memref<1x128xf32, #tpu.memory_space<vmem>>, vector<1x128xf32>
    %103 = vector.broadcast %102 : vector<1x128xf32> to vector<8x128xf32>
    %104 = arith.addf %101, %103 : vector<8x128xf32>
    %cst_50 = arith.constant 0.000000e+00 : f32
    %105 = vector.broadcast %cst_50 : f32 to vector<8x128xf32>
    %106 = arith.maximumf %104, %105 : vector<8x128xf32>
    %c0_51 = arith.constant 0 : index
    %c0_52 = arith.constant 0 : index
    %107 = vector.load %arg8[%c0_51, %c0_52] : memref<128x128xf32, #tpu.memory_space<vmem>>, vector<128x128xf32>
    %cst_53 = arith.constant dense<0.000000e+00> : vector<8x128xf32>
    %108 = tpu.matmul %106, %107, %cst_53 {dimension_numbers = #tpu.dot_dimension_numbers<[1], [0], [0], [1], [0, 0, 1, 1], [], []>} : vector<8x128xf32>, vector<128x128xf32>, vector<8x128xf32> -> vector<8x128xf32>
    %c0_54 = arith.constant 0 : index
    %c0_55 = arith.constant 0 : index
    %109 = vector.load %arg9[%c0_54, %c0_55] : memref<1x128xf32, #tpu.memory_space<vmem>>, vector<1x128xf32>
    %110 = vector.broadcast %109 : vector<1x128xf32> to vector<8x128xf32>
    %111 = arith.addf %108, %110 : vector<8x128xf32>
    %cst_56 = arith.constant 0.000000e+00 : f32
    %112 = vector.broadcast %cst_56 : f32 to vector<8x128xf32>
    %113 = arith.maximumf %111, %112 : vector<8x128xf32>
    %c0_57 = arith.constant 0 : index
    %c0_58 = arith.constant 0 : index
    %114 = vector.load %arg10[%c0_57, %c0_58] : memref<128x128xf32, #tpu.memory_space<vmem>>, vector<128x128xf32>
    %cst_59 = arith.constant dense<0.000000e+00> : vector<8x128xf32>
    %115 = tpu.matmul %113, %114, %cst_59 {dimension_numbers = #tpu.dot_dimension_numbers<[1], [0], [0], [1], [0, 0, 1, 1], [], []>} : vector<8x128xf32>, vector<128x128xf32>, vector<8x128xf32> -> vector<8x128xf32>
    %c0_60 = arith.constant 0 : index
    %c0_61 = arith.constant 0 : index
    %116 = vector.load %arg11[%c0_60, %c0_61] : memref<1x128xf32, #tpu.memory_space<vmem>>, vector<1x128xf32>
    %117 = vector.broadcast %116 : vector<1x128xf32> to vector<8x128xf32>
    %118 = arith.addf %115, %117 : vector<8x128xf32>
    %c0_62 = arith.constant 0 : index
    %c0_63 = arith.constant 0 : index
    %119 = vector.load %arg12[%c0_62, %c0_63] : memref<8x128xf32, #tpu.memory_space<vmem>>, vector<8x128xf32>
    tpu.vector_store %arg12[%c0_62, %c0_63], %118 {strides = array<i32>} : memref<8x128xf32, #tpu.memory_space<vmem>>, vector<8x128xf32>,
    return
  }
  func.func @transform_0(%arg0: i32) -> (i32, i32, i32) {
    %c0_i32 = arith.constant 0 : i32
    %c0_i32_0 = arith.constant 0 : i32
    %c0_i32_1 = arith.constant 0 : i32
    return %c0_i32, %arg0, %c0_i32_0 : i32, i32, i32
  }
  func.func @transform_1(%arg0: i32) -> (i32, i32, i32) {
    %c0_i32 = arith.constant 0 : i32
    %c0_i32_0 = arith.constant 0 : i32
    %c0_i32_1 = arith.constant 0 : i32
    %c0_i32_2 = arith.constant 0 : i32
    return %c0_i32, %c0_i32_0, %c0_i32_1 : i32, i32, i32
  }
  func.func @transform_2(%arg0: i32) -> (i32, i32) {
    %c0_i32 = arith.constant 0 : i32
    %c0_i32_0 = arith.constant 0 : i32
    %c0_i32_1 = arith.constant 0 : i32
    return %c0_i32, %c0_i32_0 : i32, i32
  }
  func.func @transform_3(%arg0: i32) -> (i32, i32, i32) {
    %c0_i32 = arith.constant 0 : i32
    %c0_i32_0 = arith.constant 0 : i32
    %c0_i32_1 = arith.constant 0 : i32
    %c0_i32_2 = arith.constant 0 : i32
    return %c0_i32, %c0_i32_0, %c0_i32_1 : i32, i32, i32
  }
  func.func @transform_4(%arg0: i32) -> (i32, i32) {
    %c0_i32 = arith.constant 0 : i32
    %c0_i32_0 = arith.constant 0 : i32
    %c0_i32_1 = arith.constant 0 : i32
    return %c0_i32, %c0_i32_0 : i32, i32
  }
  func.func @transform_5(%arg0: i32) -> (i32, i32) {
    %c0_i32 = arith.constant 0 : i32
    %c0_i32_0 = arith.constant 0 : i32
    %c0_i32_1 = arith.constant 0 : i32
    return %c0_i32, %c0_i32_0 : i32, i32
  }
  func.func @transform_6(%arg0: i32) -> (i32, i32) {
    %c0_i32 = arith.constant 0 : i32
    %c0_i32_0 = arith.constant 0 : i32
    %c0_i32_1 = arith.constant 0 : i32
    return %c0_i32, %c0_i32_0 : i32, i32
  }
  func.func @transform_7(%arg0: i32) -> (i32, i32) {
    %c0_i32 = arith.constant 0 : i32
    %c0_i32_0 = arith.constant 0 : i32
    %c0_i32_1 = arith.constant 0 : i32
    return %c0_i32, %c0_i32_0 : i32, i32
  }
  func.func @transform_8(%arg0: i32) -> (i32, i32) {
    %c0_i32 = arith.constant 0 : i32
    %c0_i32_0 = arith.constant 0 : i32
    %c0_i32_1 = arith.constant 0 : i32
    return %c0_i32, %c0_i32_0 : i32, i32
  }
  func.func @transform_9(%arg0: i32) -> (i32, i32) {
    %c0_i32 = arith.constant 0 : i32
    %c0_i32_0 = arith.constant 0 : i32
    %c0_i32_1 = arith.constant 0 : i32
    return %c0_i32, %c0_i32_0 : i32, i32
  }
  func.func @transform_10(%arg0: i32) -> (i32, i32) {
    %c0_i32 = arith.constant 0 : i32
    %c0_i32_0 = arith.constant 0 : i32
    %c0_i32_1 = arith.constant 0 : i32
    return %c0_i32, %c0_i32_0 : i32, i32
  }
  func.func @transform_11(%arg0: i32) -> (i32, i32) {
    %c0_i32 = arith.constant 0 : i32
    %c0_i32_0 = arith.constant 0 : i32
    return %arg0, %c0_i32 : i32, i32
  }
}

</mosaic_0001>

<llo_original>
// kernel: tpu_custom_call.1
$region0: #{tpu_custom_call.1}
  #allocation0 [shape = 'u32[]', space=smem, size = 0x4, offset = 0x4, fixed_abs, tag = 'smem constant byte address 0x4 - core index']
  #allocation1 [shape = 'u32[72,128]{1,0:T(1,128)}', space=vmem, size = 0x9000, scoped, tag = 'internal scratch']
  %s0 = inlined_call_operand.hbm [shape: f32[28,8,28], index: 0, kind: input, shape index: {}]
  %s1 = inlined_call_operand.hbm [shape: f32[5,28,144], index: 1, kind: input, shape index: {}]
  %s2 = inlined_call_operand.hbm [shape: f32[1,144], index: 2, kind: input, shape index: {}]
  %s3 = inlined_call_operand.hbm [shape: f32[5,138,128], index: 3, kind: input, shape index: {}]
  %s4 = inlined_call_operand.vmem [shape: f32[1,128], index: 4, kind: input, shape index: {}]
  %s5 = inlined_call_operand.hbm [shape: f32[448,128], index: 5, kind: input, shape index: {}]
  %s6 = inlined_call_operand.vmem [shape: f32[1,128], index: 6, kind: input, shape index: {}]
  %s7 = inlined_call_operand.hbm [shape: f32[128,128], index: 7, kind: input, shape index: {}]
  %s8 = inlined_call_operand.vmem [shape: f32[1,128], index: 8, kind: input, shape index: {}]
  %s9 = inlined_call_operand.hbm [shape: f32[128,128], index: 9, kind: input, shape index: {}]
  %s10 = inlined_call_operand.vmem [shape: f32[1,128], index: 10, kind: input, shape index: {}]
  %s11 = inlined_call_operand.hbm [shape: f32[8,128], index: 11, kind: output, shape index: {}]
  %s12 = sld [smem:[#allocation0]]
  $region82: #{tpu_custom_call.1} parent=0
    _
  %s14 = ssub.s32 1, %s12
  %s15 = scalar_select 0, %s14, %s12
  $region1: #{tpu_custom_call.1} parent=0
    #allocation2 [shape = 'u8[114688]{0}', space=vmem, size = 0x1c000, scoped, tag = 'input window, operand 0, single buffered']
    #allocation3 [shape = 's32[1]{0}', space=sflag, size = 0x4, scoped, tag = 'scoped memory for tpu_custom_call.1']
    #allocation4 [shape = 's32[1]{0}', space=sflag, size = 0x4, scoped, tag = 'scoped memory for tpu_custom_call.1']
    #allocation5 [shape = 'u8[163840]{0}', space=vmem, size = 0x28000, scoped, tag = 'input window, operand 1, single buffered']
    #allocation6 [shape = 's32[1]{0}', space=sflag, size = 0x4, scoped, tag = 'scoped memory for tpu_custom_call.1']
    #allocation7 [shape = 'u8[1024]{0}', space=vmem, size = 0x400, scoped, tag = 'input window, operand 2, single buffered']
    #allocation8 [shape = 'u8[368640]{0}', space=vmem, size = 0x5a000, scoped, tag = 'input window, operand 3, single buffered']
    #allocation9 [shape = 's32[1]{0}', space=sflag, size = 0x4, scoped, tag = 'scoped memory for tpu_custom_call.1']
    #allocation10 [shape = 'u8[229376]{0}', space=vmem, size = 0x38000, scoped, tag = 'input window, operand 5, single buffered']
    #allocation11 [shape = 'u8[65536]{0}', space=vmem, size = 0x10000, scoped, tag = 'input window, operand 7, single buffered']
    #allocation12 [shape = 's32[1]{0}', space=sflag, size = 0x4, scoped, tag = 'scoped memory for tpu_custom_call.1']
    #allocation13 [shape = 'u8[65536]{0}', space=vmem, size = 0x10000, scoped, tag = 'input window, operand 9, single buffered']
    #allocation14 [shape = 'u8[4096]{0}', space=vmem, size = 0x1000, scoped, tag = 'output window, operand 0, single buffered']
    %16 = vsyncpa [#allocation3], 0
    %17 = vsyncpa [#allocation6], 0
    %18 = vsyncpa [#allocation9], 0
    %19 = vsyncpa [#allocation12], 0
    %20 = vsyncpa [#allocation4], 0
    // Predicated region
    $region2: #{tpu_custom_call.1} parent=1 // pred_check
      _
    $region3: #{tpu_custom_call.1} parent=1 // pred_check_branch
      %22 = sbr.rel (0) target = $region5
    $region4: #{tpu_custom_call.1} parent=1 // pred_region
      %24 = vsyncadd [#allocation3], 0
      %s25 = sshll.u32 %s0, 4
      %s26 = int_to_ptr.hbm [resolvable:$true] %s25
      %s27 = sshll.u32 [#allocation2], 4
      %s28 = int_to_ptr.vmem [resolvable:$true] %s27
      %33 = dma.hbm_to_vmem [thread:$0]  %s26, 3584, %s28, [#allocation3], 128, 128, 8
    $region5: #{tpu_custom_call.1} parent=1 // pred_fallthru
      _
    // Predicated region
    $region6: #{tpu_custom_call.1} parent=1 // pred_check
      _
    $region7: #{tpu_custom_call.1} parent=1 // pred_check_branch
      %35 = sbr.rel (0) target = $region9
    $region8: #{tpu_custom_call.1} parent=1 // pred_region
      %37 = vsyncadd [#allocation6], 0
      %s38 = sshll.u32 %s1, 4
      %s39 = int_to_ptr.hbm [resolvable:$true] %s38
      %s40 = sshll.u32 [#allocation5], 4
      %s41 = int_to_ptr.vmem [resolvable:$true] %s40
      %46 = dma.hbm_to_vmem [thread:$0]  %s39, 5120, %s41, [#allocation6], 256, 256, 16
    $region9: #{tpu_custom_call.1} parent=1 // pred_fallthru
      _
    // Predicated region
    $region10: #{tpu_custom_call.1} parent=1 // pred_check
      _
    $region11: #{tpu_custom_call.1} parent=1 // pred_check_branch
      %48 = sbr.rel (0) target = $region13
    $region12: #{tpu_custom_call.1} parent=1 // pred_region
      %50 = vsyncadd [#allocation6], 0
      %s52 = sshll.u32 %s2, 4
      %s53 = int_to_ptr.hbm [resolvable:$true] %s52
      %s54 = sshll.u32 [#allocation7], 4
      %s55 = int_to_ptr.vmem [resolvable:$true] %s54
      %57 = dma.hbm_to_vmem [thread:$0]  %s53, 32, %s55, [#allocation6]
    $region13: #{tpu_custom_call.1} parent=1 // pred_fallthru
      _
    // Predicated region
    $region14: #{tpu_custom_call.1} parent=1 // pred_check
      _
    $region15: #{tpu_custom_call.1} parent=1 // pred_check_branch
      %59 = sbr.rel (0) target = $region17
    $region16: #{tpu_custom_call.1} parent=1 // pred_region
      %61 = vsyncadd [#allocation9], 0
      %s62 = sshll.u32 %s3, 4
      %s63 = int_to_ptr.hbm [resolvable:$true] %s62
      %s64 = sshll.u32 [#allocation8], 4
      %s65 = int_to_ptr.vmem [resolvable:$true] %s64
      %70 = dma.hbm_to_vmem [thread:$0]  %s63, 11520, %s65, [#allocation9], 128, 128, 8
    $region17: #{tpu_custom_call.1} parent=1 // pred_fallthru
      _
    // Predicated region
    $region18: #{tpu_custom_call.1} parent=1 // pred_check
      _
    $region19: #{tpu_custom_call.1} parent=1 // pred_check_branch
      %72 = sbr.rel (0) target = $region21
    $region20: #{tpu_custom_call.1} parent=1 // pred_region
      _
    $region21: #{tpu_custom_call.1} parent=1 // pred_fallthru
      _
    // Predicated region
    $region22: #{tpu_custom_call.1} parent=1 // pred_check
      _
    $region23: #{tpu_custom_call.1} parent=1 // pred_check_branch
      %74 = sbr.rel (0) target = $region25
    $region24: #{tpu_custom_call.1} parent=1 // pred_region
      %76 = vsyncadd [#allocation9], 0
      %s77 = sshll.u32 %s5, 4
      %s78 = int_to_ptr.hbm [resolvable:$true] %s77
      %s79 = sshll.u32 [#allocation10], 4
      %s80 = int_to_ptr.vmem [resolvable:$true] %s79
      %85 = dma.hbm_to_vmem [thread:$0]  %s78, 7168, %s80, [#allocation9], 128, 128, 8
    $region25: #{tpu_custom_call.1} parent=1 // pred_fallthru
      _
    // Predicated region
    $region26: #{tpu_custom_call.1} parent=1 // pred_check
      _
    $region27: #{tpu_custom_call.1} parent=1 // pred_check_branch
      %87 = sbr.rel (0) target = $region29
    $region28: #{tpu_custom_call.1} parent=1 // pred_region
      _
    $region29: #{tpu_custom_call.1} parent=1 // pred_fallthru
      _
    // Predicated region
    $region30: #{tpu_custom_call.1} parent=1 // pred_check
      _
    $region31: #{tpu_custom_call.1} parent=1 // pred_check_branch
      %89 = sbr.rel (0) target = $region33
    $region32: #{tpu_custom_call.1} parent=1 // pred_region
      %91 = vsyncadd [#allocation12], 0
      %s92 = sshll.u32 %s7, 4
      %s93 = int_to_ptr.hbm [resolvable:$true] %s92
      %s94 = sshll.u32 [#allocation11], 4
      %s95 = int_to_ptr.vmem [resolvable:$true] %s94
      %100 = dma.hbm_to_vmem [thread:$0]  %s93, 2048, %s95, [#allocation12], 128, 128, 8
    $region33: #{tpu_custom_call.1} parent=1 // pred_fallthru
      _
    // Predicated region
    $region34: #{tpu_custom_call.1} parent=1 // pred_check
      _
    $region35: #{tpu_custom_call.1} parent=1 // pred_check_branch
      %102 = sbr.rel (0) target = $region37
    $region36: #{tpu_custom_call.1} parent=1 // pred_region
      _
    $region37: #{tpu_custom_call.1} parent=1 // pred_fallthru
      _
    // Predicated region
    $region38: #{tpu_custom_call.1} parent=1 // pred_check
      _
    $region39: #{tpu_custom_call.1} parent=1 // pred_check_branch
      %104 = sbr.rel (0) target = $region41
    $region40: #{tpu_custom_call.1} parent=1 // pred_region
      %106 = vsyncadd [#allocation12], 0
      %s107 = sshll.u32 %s9, 4
      %s108 = int_to_ptr.hbm [resolvable:$true] %s107
      %s109 = sshll.u32 [#allocation13], 4
      %s110 = int_to_ptr.vmem [resolvable:$true] %s109
      %115 = dma.hbm_to_vmem [thread:$0]  %s108, 2048, %s110, [#allocation12], 128, 128, 8
    $region41: #{tpu_custom_call.1} parent=1 // pred_fallthru
      _
    // Predicated region
    $region42: #{tpu_custom_call.1} parent=1 // pred_check
      _
    $region43: #{tpu_custom_call.1} parent=1 // pred_check_branch
      %117 = sbr.rel (0) target = $region45
    $region44: #{tpu_custom_call.1} parent=1 // pred_region
      _
    $region45: #{tpu_custom_call.1} parent=1 // pred_fallthru
      _
    // Predicated region
    $region46: #{tpu_custom_call.1} parent=1 // pred_check
      _
    $region47: #{tpu_custom_call.1} parent=1 // pred_check_branch
      %119 = sbr.rel (0) target = $region49
    $region48: #{tpu_custom_call.1} parent=1 // pred_region
      %121 = dma.done [#allocation3], 3584
    $region49: #{tpu_custom_call.1} parent=1 // pred_fallthru
      _
    // Predicated region
    $region50: #{tpu_custom_call.1} parent=1 // pred_check
      _
    $region51: #{tpu_custom_call.1} parent=1 // pred_check_branch
      %123 = sbr.rel (0) target = $region53
    $region52: #{tpu_custom_call.1} parent=1 // pred_region
      %125 = dma.done [#allocation6], 5120
    $region53: #{tpu_custom_call.1} parent=1 // pred_fallthru
      _
    // Predicated region
    $region54: #{tpu_custom_call.1} parent=1 // pred_check
      _
    $region55: #{tpu_custom_call.1} parent=1 // pred_check_branch
      %127 = sbr.rel (0) target = $region57
    $region56: #{tpu_custom_call.1} parent=1 // pred_region
      %129 = dma.done [#allocation6], 32
    $region57: #{tpu_custom_call.1} parent=1 // pred_fallthru
      _
    // Predicated region
    $region58: #{tpu_custom_call.1} parent=1 // pred_check
      _
    $region59: #{tpu_custom_call.1} parent=1 // pred_check_branch
      %131 = sbr.rel (0) target = $region61
    $region60: #{tpu_custom_call.1} parent=1 // pred_region
      %133 = dma.done [#allocation9], 11520
    $region61: #{tpu_custom_call.1} parent=1 // pred_fallthru
      _
    // Predicated region
    $region62: #{tpu_custom_call.1} parent=1 // pred_check
      _
    $region63: #{tpu_custom_call.1} parent=1 // pred_check_branch
      %135 = sbr.rel (0) target = $region65
    $region64: #{tpu_custom_call.1} parent=1 // pred_region
      %137 = dma.done [#allocation9], 7168
    $region65: #{tpu_custom_call.1} parent=1 // pred_fallthru
      _
    // Predicated region
    $region66: #{tpu_custom_call.1} parent=1 // pred_check
      _
    $region67: #{tpu_custom_call.1} parent=1 // pred_check_branch
      %139 = sbr.rel (0) target = $region69
    $region68: #{tpu_custom_call.1} parent=1 // pred_region
      %141 = dma.done [#allocation12], 2048
    $region69: #{tpu_custom_call.1} parent=1 // pred_fallthru
      _
    // Predicated region
    $region70: #{tpu_custom_call.1} parent=1 // pred_check
      _
    $region71: #{tpu_custom_call.1} parent=1 // pred_check_branch
      %143 = sbr.rel (0) target = $region73
    $region72: #{tpu_custom_call.1} parent=1 // pred_region
      %145 = dma.done [#allocation12], 2048
    $region73: #{tpu_custom_call.1} parent=1 // pred_fallthru
      _
    %v146 = vld [vmem:[#allocation2] sm:$0xff]
    %v147 = vld [vmem:[#allocation2 + $0x8] sm:$0xff]
    %v148 = vld [vmem:[#allocation2 + $0x10] sm:$0xff]
    %v149 = vld [vmem:[#allocation2 + $0x18] sm:$0xff]
    %v150 = vld [vmem:[#allocation2 + $0x20] sm:$0xff]
    %v151 = vld [vmem:[#allocation2 + $0x28] sm:$0xff]
    %v152 = vld [vmem:[#allocation2 + $0x30] sm:$0xff]
    %v153 = vld [vmem:[#allocation2 + $0x38] sm:$0xff]
    %v154 = vld [vmem:[#allocation2 + $0x40] sm:$0xff]
    %v155 = vld [vmem:[#allocation2 + $0x48] sm:$0xff]
    %v156 = vld [vmem:[#allocation2 + $0x50] sm:$0xff]
    %v157 = vld [vmem:[#allocation2 + $0x58] sm:$0xff]
    %v158 = vld [vmem:[#allocation2 + $0x60] sm:$0xff]
    %v159 = vld [vmem:[#allocation2 + $0x68] sm:$0xff]
    %v160 = vld [vmem:[#allocation2 + $0x70] sm:$0xff]
    %v161 = vld [vmem:[#allocation2 + $0x78] sm:$0xff]
    %v162 = vld [vmem:[#allocation2 + $0x80] sm:$0xff]
    %v163 = vld [vmem:[#allocation2 + $0x88] sm:$0xff]
    %v164 = vld [vmem:[#allocation2 + $0x90] sm:$0xff]
    %v165 = vld [vmem:[#allocation2 + $0x98] sm:$0xff]
    %v166 = vld [vmem:[#allocation2 + $0xa0] sm:$0xff]
    %v167 = vld [vmem:[#allocation2 + $0xa8] sm:$0xff]
    %v168 = vld [vmem:[#allocation2 + $0xb0] sm:$0xff]
    %v169 = vld [vmem:[#allocation2 + $0xb8] sm:$0xff]
    %v170 = vld [vmem:[#allocation2 + $0xc0] sm:$0xff]
    %v171 = vld [vmem:[#allocation2 + $0xc8] sm:$0xff]
    %v172 = vld [vmem:[#allocation2 + $0xd0] sm:$0xff]
    %v173 = vld [vmem:[#allocation2 + $0xd8] sm:$0xff]
    %v174 = vld [vmem:[#allocation5] sm:$0xff]
    %v175 = vld [vmem:[#allocation5 + $0x8] sm:$0xff]
    %v176 = vld [vmem:[#allocation5 + $0x10] sm:$0xff]
    %v177 = vld [vmem:[#allocation5 + $0x18] sm:$0xff]
    %v178 = vld [vmem:[#allocation5 + $0x20] sm:$0xff]
    %v179 = vld [vmem:[#allocation5 + $0x28] sm:$0xff]
    %v180 = vld [vmem:[#allocation5 + $0x30] sm:$0xf]
    %v181 = vld [vmem:[#allocation5 + $0x38] sm:$0xf]
    %s182 = scalar_lea.vmem [#allocation5], 64
    %v183 = vld [vmem:[%s182] sm:$0xff]
    %v184 = vld [vmem:[%s182 + $0x8] sm:$0xff]
    %v185 = vld [vmem:[%s182 + $0x10] sm:$0xff]
    %v186 = vld [vmem:[%s182 + $0x18] sm:$0xff]
    %v187 = vld [vmem:[%s182 + $0x20] sm:$0xff]
    %v188 = vld [vmem:[%s182 + $0x28] sm:$0xff]
    %v189 = vld [vmem:[%s182 + $0x30] sm:$0xf]
    %v190 = vld [vmem:[%s182 + $0x38] sm:$0xf]
    %vm191 = vcmask 228352
    %v193 = vsel %vm191, %v147, 0
    %v196 = vsel %vm191, %v148, 0
    %v199 = vsel %vm191, %v149, 0
    %v202 = vsel %vm191, %v150, 0
    %v205 = vsel %vm191, %v151, 0
    %v208 = vsel %vm191, %v152, 0
    %v211 = vsel %vm191, %v153, 0
    %v214 = vsel %vm191, %v154, 0
    %v217 = vsel %vm191, %v155, 0
    %v220 = vsel %vm191, %v156, 0
    %v223 = vsel %vm191, %v157, 0
    %v226 = vsel %vm191, %v158, 0
    %v229 = vsel %vm191, %v159, 0
    %v232 = vsel %vm191, %v160, 0
    %v235 = vsel %vm191, %v161, 0
    %v238 = vsel %vm191, %v162, 0
    %v241 = vsel %vm191, %v163, 0
    %v244 = vsel %vm191, %v164, 0
    %v247 = vsel %vm191, %v165, 0
    %v250 = vsel %vm191, %v166, 0
    %v253 = vsel %vm191, %v167, 0
    %v256 = vsel %vm191, %v168, 0
    %v259 = vsel %vm191, %v169, 0
    %v262 = vsel %vm191, %v170, 0
    %vm264 = vcmask 1043456
    %v266 = vsel %vm264, %v189, 0
    %v269 = vsel %vm264, %v190, 0
    %271 = vmatpush.msra.mxu0 0.0
    %272 = vmatpush.msra.mxu0 0.0
    %273 = vmatpush.msra.mxu0 0.0
    %274 = vmatpush.msra.mxu0 0.0
    %275 = vmatpush.msra.mxu0 0.0
    %276 = vmatpush.msra.mxu0 0.0
    %277 = vmatpush.msra.mxu0 0.0
    %278 = vmatpush.msra.mxu0 0.0
    %279 = vmatpush.msra.mxu0 0.0
    %280 = vmatpush.msra.mxu0 0.0
    %281 = vmatpush.msra.mxu0 0.0
    %282 = vmatpush.msra.mxu0 0.0
    %283 = vmatpush.msra.mxu0 %v266
    %284 = vmatpush.msra.mxu0 %v187
    %285 = vmatpush.msra.mxu0 %v185
    %286 = vmatpush.msra.mxu0 %v183
    %287 = vmatmul.f32.gmra.mxu0 %v193
    %v288 = vpop.f32.mrf.mxu0
    %v289 = vadd.f32 0.0, %v288
    %290 = vmatmul.f32.gmra.mxu0 %v196
    %v291 = vpop.f32.mrf.mxu0
    %v292 = vadd.f32 0.0, %v291
    %293 = vmatmul.f32.gmra.mxu0 %v199
    %v294 = vpop.f32.mrf.mxu0
    %v295 = vadd.f32 0.0, %v294
    %296 = vmatmul.f32.gmra.mxu0 %v202
    %v297 = vpop.f32.mrf.mxu0
    %v298 = vadd.f32 0.0, %v297
    %299 = vmatmul.f32.gmra.mxu0 %v205
    %v300 = vpop.f32.mrf.mxu0
    %v301 = vadd.f32 0.0, %v300
    %302 = vmatmul.f32.gmra.mxu0 %v208
    %v303 = vpop.f32.mrf.mxu0
    %v304 = vadd.f32 0.0, %v303
    %305 = vmatmul.f32.gmra.mxu0 %v211
    %v306 = vpop.f32.mrf.mxu0
    %v307 = vadd.f32 0.0, %v306
    %308 = vmatmul.f32.gmra.mxu0 %v214
    %v309 = vpop.f32.mrf.mxu0
    %v310 = vadd.f32 0.0, %v309
    %311 = vmatmul.f32.gmra.mxu0 %v217
    %v312 = vpop.f32.mrf.mxu0
    %v313 = vadd.f32 0.0, %v312
    %314 = vmatmul.f32.gmra.mxu0 %v220
    %v315 = vpop.f32.mrf.mxu0
    %v316 = vadd.f32 0.0, %v315
    %317 = vmatmul.f32.gmra.mxu0 %v223
    %v318 = vpop.f32.mrf.mxu0
    %v319 = vadd.f32 0.0, %v318
    %320 = vmatmul.f32.gmra.mxu0 %v226
    %v321 = vpop.f32.mrf.mxu0
    %v322 = vadd.f32 0.0, %v321
    %323 = vmatmul.f32.gmra.mxu0 %v229
    %v324 = vpop.f32.mrf.mxu0
    %v325 = vadd.f32 0.0, %v324
    %326 = vmatmul.f32.gmra.mxu0 %v232
    %v327 = vpop.f32.mrf.mxu0
    %v328 = vadd.f32 0.0, %v327
    %329 = vmatmul.f32.gmra.mxu0 %v235
    %v330 = vpop.f32.mrf.mxu0
    %v331 = vadd.f32 0.0, %v330
    %332 = vmatmul.f32.gmra.mxu0 %v238
    %v333 = vpop.f32.mrf.mxu0
    %v334 = vadd.f32 0.0, %v333
    %335 = vmatmul.f32.gmra.mxu0 %v241
    %v336 = vpop.f32.mrf.mxu0
    %v337 = vadd.f32 0.0, %v336
    %338 = vmatmul.f32.gmra.mxu0 %v244
    %v339 = vpop.f32.mrf.mxu0
    %v340 = vadd.f32 0.0, %v339
    %341 = vmatmul.f32.gmra.mxu0 %v247
    %v342 = vpop.f32.mrf.mxu0
    %v343 = vadd.f32 0.0, %v342
    %344 = vmatmul.f32.gmra.mxu0 %v250
    %v345 = vpop.f32.mrf.mxu0
    %v346 = vadd.f32 0.0, %v345
    %347 = vmatmul.f32.gmra.mxu0 %v253
    %v348 = vpop.f32.mrf.mxu0
    %v349 = vadd.f32 0.0, %v348
    %350 = vmatmul.f32.gmra.mxu0 %v256
    %v351 = vpop.f32.mrf.mxu0
    %v352 = vadd.f32 0.0, %v351
    %353 = vmatmul.f32.gmra.mxu0 %v259
    %v354 = vpop.f32.mrf.mxu0
    %v355 = vadd.f32 0.0, %v354
    %356 = vmatmul.f32.gmra.mxu0 %v262
    %v357 = vpop.f32.mrf.mxu0
    %v358 = vadd.f32 0.0, %v357
    %359 = vdwg.mxu0
    %360 = vmatpush.msra.mxu0 0.0
    %361 = vmatpush.msra.mxu0 0.0
    %362 = vmatpush.msra.mxu0 0.0
    %363 = vmatpush.msra.mxu0 0.0
    %364 = vmatpush.msra.mxu0 0.0
    %365 = vmatpush.msra.mxu0 0.0
    %366 = vmatpush.msra.mxu0 0.0
    %367 = vmatpush.msra.mxu0 0.0
    %368 = vmatpush.msra.mxu0 0.0
    %369 = vmatpush.msra.mxu0 0.0
    %370 = vmatpush.msra.mxu0 0.0
    %371 = vmatpush.msra.mxu0 0.0
    %372 = vmatpush.msra.mxu0 %v269
    %373 = vmatpush.msra.mxu0 %v188
    %374 = vmatpush.msra.mxu0 %v186
    %375 = vmatpush.msra.mxu0 %v184
    %376 = vmatmul.f32.gmra.mxu0 %v193
    %v377 = vpop.f32.mrf.mxu0
    %v378 = vadd.f32 0.0, %v377
    %379 = vmatmul.f32.gmra.mxu0 %v196
    %v380 = vpop.f32.mrf.mxu0
    %v381 = vadd.f32 0.0, %v380
    %382 = vmatmul.f32.gmra.mxu0 %v199
    %v383 = vpop.f32.mrf.mxu0
    %v384 = vadd.f32 0.0, %v383
    %385 = vmatmul.f32.gmra.mxu0 %v202
    %v386 = vpop.f32.mrf.mxu0
    %v387 = vadd.f32 0.0, %v386
    %388 = vmatmul.f32.gmra.mxu0 %v205
    %v389 = vpop.f32.mrf.mxu0
    %v390 = vadd.f32 0.0, %v389
    %391 = vmatmul.f32.gmra.mxu0 %v208
    %v392 = vpop.f32.mrf.mxu0
    %v393 = vadd.f32 0.0, %v392
    %394 = vmatmul.f32.gmra.mxu0 %v211
    %v395 = vpop.f32.mrf.mxu0
    %v396 = vadd.f32 0.0, %v395
    %397 = vmatmul.f32.gmra.mxu0 %v214
    %v398 = vpop.f32.mrf.mxu0
    %v399 = vadd.f32 0.0, %v398
    %400 = vmatmul.f32.gmra.mxu0 %v217
    %v401 = vpop.f32.mrf.mxu0
    %v402 = vadd.f32 0.0, %v401
    %403 = vmatmul.f32.gmra.mxu0 %v220
    %v404 = vpop.f32.mrf.mxu0
    %v405 = vadd.f32 0.0, %v404
    %406 = vmatmul.f32.gmra.mxu0 %v223
    %v407 = vpop.f32.mrf.mxu0
    %v408 = vadd.f32 0.0, %v407
    %409 = vmatmul.f32.gmra.mxu0 %v226
    %v410 = vpop.f32.mrf.mxu0
    %v411 = vadd.f32 0.0, %v410
    %412 = vmatmul.f32.gmra.mxu0 %v229
    %v413 = vpop.f32.mrf.mxu0
    %v414 = vadd.f32 0.0, %v413
    %415 = vmatmul.f32.gmra.mxu0 %v232
    %v416 = vpop.f32.mrf.mxu0
    %v417 = vadd.f32 0.0, %v416
    %418 = vmatmul.f32.gmra.mxu0 %v235
    %v419 = vpop.f32.mrf.mxu0
    %v420 = vadd.f32 0.0, %v419
    %421 = vmatmul.f32.gmra.mxu0 %v238
    %v422 = vpop.f32.mrf.mxu0
    %v423 = vadd.f32 0.0, %v422
    %424 = vmatmul.f32.gmra.mxu0 %v241
    %v425 = vpop.f32.mrf.mxu0
    %v426 = vadd.f32 0.0, %v425
    %427 = vmatmul.f32.gmra.mxu0 %v244
    %v428 = vpop.f32.mrf.mxu0
    %v429 = vadd.f32 0.0, %v428
    %430 = vmatmul.f32.gmra.mxu0 %v247
    %v431 = vpop.f32.mrf.mxu0
    %v432 = vadd.f32 0.0, %v431
    %433 = vmatmul.f32.gmra.mxu0 %v250
    %v434 = vpop.f32.mrf.mxu0
    %v435 = vadd.f32 0.0, %v434
    %436 = vmatmul.f32.gmra.mxu0 %v253
    %v437 = vpop.f32.mrf.mxu0
    %v438 = vadd.f32 0.0, %v437
    %439 = vmatmul.f32.gmra.mxu0 %v256
    %v440 = vpop.f32.mrf.mxu0
    %v441 = vadd.f32 0.0, %v440
    %442 = vmatmul.f32.gmra.mxu0 %v259
    %v443 = vpop.f32.mrf.mxu0
    %v444 = vadd.f32 0.0, %v443
    %445 = vmatmul.f32.gmra.mxu0 %v262
    %v446 = vpop.f32.mrf.mxu0
    %v447 = vadd.f32 0.0, %v446
    %448 = vdwg.mxu0
    %v450 = vsel %vm191, %v146, 0
    %v453 = vsel %vm264, %v180, 0
    %v456 = vsel %vm264, %v181, 0
    %458 = vmatpush.msra.mxu0 0.0
    %459 = vmatpush.msra.mxu0 0.0
    %460 = vmatpush.msra.mxu0 0.0
    %461 = vmatpush.msra.mxu0 0.0
    %462 = vmatpush.msra.mxu0 0.0
    %463 = vmatpush.msra.mxu0 0.0
    %464 = vmatpush.msra.mxu0 0.0
    %465 = vmatpush.msra.mxu0 0.0
    %466 = vmatpush.msra.mxu0 0.0
    %467 = vmatpush.msra.mxu0 0.0
    %468 = vmatpush.msra.mxu0 0.0
    %469 = vmatpush.msra.mxu0 0.0
    %470 = vmatpush.msra.mxu0 %v453
    %471 = vmatpush.msra.mxu0 %v178
    %472 = vmatpush.msra.mxu0 %v176
    %473 = vmatpush.msra.mxu0 %v174
    %474 = vmatmul.f32.gmra.mxu0 %v450
    %v475 = vpop.f32.mrf.mxu0
    %v476 = vadd.f32 %v289, %v475
    %477 = vmatmul.f32.gmra.mxu0 %v193
    %v478 = vpop.f32.mrf.mxu0
    %v479 = vadd.f32 %v292, %v478
    %480 = vmatmul.f32.gmra.mxu0 %v196
    %v481 = vpop.f32.mrf.mxu0
    %v482 = vadd.f32 %v295, %v481
    %483 = vmatmul.f32.gmra.mxu0 %v199
    %v484 = vpop.f32.mrf.mxu0
    %v485 = vadd.f32 %v298, %v484
    %486 = vmatmul.f32.gmra.mxu0 %v202
    %v487 = vpop.f32.mrf.mxu0
    %v488 = vadd.f32 %v301, %v487
    %489 = vmatmul.f32.gmra.mxu0 %v205
    %v490 = vpop.f32.mrf.mxu0
    %v491 = vadd.f32 %v304, %v490
    %492 = vmatmul.f32.gmra.mxu0 %v208
    %v493 = vpop.f32.mrf.mxu0
    %v494 = vadd.f32 %v307, %v493
    %495 = vmatmul.f32.gmra.mxu0 %v211
    %v496 = vpop.f32.mrf.mxu0
    %v497 = vadd.f32 %v310, %v496
    %498 = vmatmul.f32.gmra.mxu0 %v214
    %v499 = vpop.f32.mrf.mxu0
    %v500 = vadd.f32 %v313, %v499
    %501 = vmatmul.f32.gmra.mxu0 %v217
    %v502 = vpop.f32.mrf.mxu0
    %v503 = vadd.f32 %v316, %v502
    %504 = vmatmul.f32.gmra.mxu0 %v220
    %v505 = vpop.f32.mrf.mxu0
    %v506 = vadd.f32 %v319, %v505
    %507 = vmatmul.f32.gmra.mxu0 %v223
    %v508 = vpop.f32.mrf.mxu0
    %v509 = vadd.f32 %v322, %v508
    %510 = vmatmul.f32.gmra.mxu0 %v226
    %v511 = vpop.f32.mrf.mxu0
    %v512 = vadd.f32 %v325, %v511
    %513 = vmatmul.f32.gmra.mxu0 %v229
    %v514 = vpop.f32.mrf.mxu0
    %v515 = vadd.f32 %v328, %v514
    %516 = vmatmul.f32.gmra.mxu0 %v232
    %v517 = vpop.f32.mrf.mxu0
    %v518 = vadd.f32 %v331, %v517
    %519 = vmatmul.f32.gmra.mxu0 %v235
    %v520 = vpop.f32.mrf.mxu0
    %v521 = vadd.f32 %v334, %v520
    %522 = vmatmul.f32.gmra.mxu0 %v238
    %v523 = vpop.f32.mrf.mxu0
    %v524 = vadd.f32 %v337, %v523
    %525 = vmatmul.f32.gmra.mxu0 %v241
    %v526 = vpop.f32.mrf.mxu0
    %v527 = vadd.f32 %v340, %v526
    %528 = vmatmul.f32.gmra.mxu0 %v244
    %v529 = vpop.f32.mrf.mxu0
    %v530 = vadd.f32 %v343, %v529
    %531 = vmatmul.f32.gmra.mxu0 %v247
    %v532 = vpop.f32.mrf.mxu0
    %v533 = vadd.f32 %v346, %v532
    %534 = vmatmul.f32.gmra.mxu0 %v250
    %v535 = vpop.f32.mrf.mxu0
    %v536 = vadd.f32 %v349, %v535
    %537 = vmatmul.f32.gmra.mxu0 %v253
    %v538 = vpop.f32.mrf.mxu0
    %v539 = vadd.f32 %v352, %v538
    %540 = vmatmul.f32.gmra.mxu0 %v256
    %v541 = vpop.f32.mrf.mxu0
    %v542 = vadd.f32 %v355, %v541
    %543 = vmatmul.f32.gmra.mxu0 %v259
    %v544 = vpop.f32.mrf.mxu0
    %v545 = vadd.f32 %v358, %v544
    %546 = vdwg.mxu0
    %547 = vmatpush.msra.mxu0 0.0
    %548 = vmatpush.msra.mxu0 0.0
    %549 = vmatpush.msra.mxu0 0.0
    %550 = vmatpush.msra.mxu0 0.0
    %551 = vmatpush.msra.mxu0 0.0
    %552 = vmatpush.msra.mxu0 0.0
    %553 = vmatpush.msra.mxu0 0.0
    %554 = vmatpush.msra.mxu0 0.0
    %555 = vmatpush.msra.mxu0 0.0
    %556 = vmatpush.msra.mxu0 0.0
    %557 = vmatpush.msra.mxu0 0.0
    %558 = vmatpush.msra.mxu0 0.0
    %559 = vmatpush.msra.mxu0 %v456
    %560 = vmatpush.msra.mxu0 %v179
    %561 = vmatpush.msra.mxu0 %v177
    %562 = vmatpush.msra.mxu0 %v175
    %563 = vmatmul.f32.gmra.mxu0 %v450
    %v564 = vpop.f32.mrf.mxu0
    %v565 = vadd.f32 %v378, %v564
    %566 = vmatmul.f32.gmra.mxu0 %v193
    %v567 = vpop.f32.mrf.mxu0
    %v568 = vadd.f32 %v381, %v567
    %569 = vmatmul.f32.gmra.mxu0 %v196
    %v570 = vpop.f32.mrf.mxu0
    %v571 = vadd.f32 %v384, %v570
    %572 = vmatmul.f32.gmra.mxu0 %v199
    %v573 = vpop.f32.mrf.mxu0
    %v574 = vadd.f32 %v387, %v573
    %575 = vmatmul.f32.gmra.mxu0 %v202
    %v576 = vpop.f32.mrf.mxu0
    %v577 = vadd.f32 %v390, %v576
    %578 = vmatmul.f32.gmra.mxu0 %v205
    %v579 = vpop.f32.mrf.mxu0
    %v580 = vadd.f32 %v393, %v579
    %581 = vmatmul.f32.gmra.mxu0 %v208
    %v582 = vpop.f32.mrf.mxu0
    %v583 = vadd.f32 %v396, %v582
    %584 = vmatmul.f32.gmra.mxu0 %v211
    %v585 = vpop.f32.mrf.mxu0
    %v586 = vadd.f32 %v399, %v585
    %587 = vmatmul.f32.gmra.mxu0 %v214
    %v588 = vpop.f32.mrf.mxu0
    %v589 = vadd.f32 %v402, %v588
    %590 = vmatmul.f32.gmra.mxu0 %v217
    %v591 = vpop.f32.mrf.mxu0
    %v592 = vadd.f32 %v405, %v591
    %593 = vmatmul.f32.gmra.mxu0 %v220
    %v594 = vpop.f32.mrf.mxu0
    %v595 = vadd.f32 %v408, %v594
    %596 = vmatmul.f32.gmra.mxu0 %v223
    %v597 = vpop.f32.mrf.mxu0
    %v598 = vadd.f32 %v411, %v597
    %599 = vmatmul.f32.gmra.mxu0 %v226
    %v600 = vpop.f32.mrf.mxu0
    %v601 = vadd.f32 %v414, %v600
    %602 = vmatmul.f32.gmra.mxu0 %v229
    %v603 = vpop.f32.mrf.mxu0
    %v604 = vadd.f32 %v417, %v603
    %605 = vmatmul.f32.gmra.mxu0 %v232
    %v606 = vpop.f32.mrf.mxu0
    %v607 = vadd.f32 %v420, %v606
    %608 = vmatmul.f32.gmra.mxu0 %v235
    %v609 = vpop.f32.mrf.mxu0
    %v610 = vadd.f32 %v423, %v609
    %611 = vmatmul.f32.gmra.mxu0 %v238
    %v612 = vpop.f32.mrf.mxu0
    %v613 = vadd.f32 %v426, %v612
    %614 = vmatmul.f32.gmra.mxu0 %v241
    %v615 = vpop.f32.mrf.mxu0
    %v616 = vadd.f32 %v429, %v615
    %617 = vmatmul.f32.gmra.mxu0 %v244
    %v618 = vpop.f32.mrf.mxu0
    %v619 = vadd.f32 %v432, %v618
    %620 = vmatmul.f32.gmra.mxu0 %v247
    %v621 = vpop.f32.mrf.mxu0
    %v622 = vadd.f32 %v435, %v621
    %623 = vmatmul.f32.gmra.mxu0 %v250
    %v624 = vpop.f32.mrf.mxu0
    %v625 = vadd.f32 %v438, %v624
    %626 = vmatmul.f32.gmra.mxu0 %v253
    %v627 = vpop.f32.mrf.mxu0
    %v628 = vadd.f32 %v441, %v627
    %629 = vmatmul.f32.gmra.mxu0 %v256
    %v630 = vpop.f32.mrf.mxu0
    %v631 = vadd.f32 %v444, %v630
    %632 = vmatmul.f32.gmra.mxu0 %v259
    %v633 = vpop.f32.mrf.mxu0
    %v634 = vadd.f32 %v447, %v633
    %635 = vdwg.mxu0
    %s636 = scalar_lea.vmem [#allocation5], 128
    %v637 = vld [vmem:[%s636] sm:$0xff]
    %v638 = vld [vmem:[%s636 + $0x8] sm:$0xff]
    %v639 = vld [vmem:[%s636 + $0x10] sm:$0xff]
    %v640 = vld [vmem:[%s636 + $0x18] sm:$0xff]
    %v641 = vld [vmem:[%s636 + $0x20] sm:$0xff]
    %v642 = vld [vmem:[%s636 + $0x28] sm:$0xff]
    %v643 = vld [vmem:[%s636 + $0x30] sm:$0xf]
    %v644 = vld [vmem:[%s636 + $0x38] sm:$0xf]
    %v646 = vsel %vm191, %v171, 0
    %v649 = vsel %vm264, %v643, 0
    %v652 = vsel %vm264, %v644, 0
    %654 = vmatpush.msra.mxu0 0.0
    %655 = vmatpush.msra.mxu0 0.0
    %656 = vmatpush.msra.mxu0 0.0
    %657 = vmatpush.msra.mxu0 0.0
    %658 = vmatpush.msra.mxu0 0.0
    %659 = vmatpush.msra.mxu0 0.0
    %660 = vmatpush.msra.mxu0 0.0
    %661 = vmatpush.msra.mxu0 0.0
    %662 = vmatpush.msra.mxu0 0.0
    %663 = vmatpush.msra.mxu0 0.0
    %664 = vmatpush.msra.mxu0 0.0
    %665 = vmatpush.msra.mxu0 0.0
    %666 = vmatpush.msra.mxu0 %v649
    %667 = vmatpush.msra.mxu0 %v641
    %668 = vmatpush.msra.mxu0 %v639
    %669 = vmatpush.msra.mxu0 %v637
    %670 = vmatmul.f32.gmra.mxu0 %v196
    %v671 = vpop.f32.mrf.mxu0
    %v672 = vadd.f32 0.0, %v671
    %673 = vmatmul.f32.gmra.mxu0 %v199
    %v674 = vpop.f32.mrf.mxu0
    %v675 = vadd.f32 0.0, %v674
    %676 = vmatmul.f32.gmra.mxu0 %v202
    %v677 = vpop.f32.mrf.mxu0
    %v678 = vadd.f32 0.0, %v677
    %679 = vmatmul.f32.gmra.mxu0 %v205
    %v680 = vpop.f32.mrf.mxu0
    %v681 = vadd.f32 0.0, %v680
    %682 = vmatmul.f32.gmra.mxu0 %v208
    %v683 = vpop.f32.mrf.mxu0
    %v684 = vadd.f32 0.0, %v683
    %685 = vmatmul.f32.gmra.mxu0 %v211
    %v686 = vpop.f32.mrf.mxu0
    %v687 = vadd.f32 0.0, %v686
    %688 = vmatmul.f32.gmra.mxu0 %v214
    %v689 = vpop.f32.mrf.mxu0
    %v690 = vadd.f32 0.0, %v689
    %691 = vmatmul.f32.gmra.mxu0 %v217
    %v692 = vpop.f32.mrf.mxu0
    %v693 = vadd.f32 0.0, %v692
    %694 = vmatmul.f32.gmra.mxu0 %v220
    %v695 = vpop.f32.mrf.mxu0
    %v696 = vadd.f32 0.0, %v695
    %697 = vmatmul.f32.gmra.mxu0 %v223
    %v698 = vpop.f32.mrf.mxu0
    %v699 = vadd.f32 0.0, %v698
    %700 = vmatmul.f32.gmra.mxu0 %v226
    %v701 = vpop.f32.mrf.mxu0
    %v702 = vadd.f32 0.0, %v701
    %703 = vmatmul.f32.gmra.mxu0 %v229
    %v704 = vpop.f32.mrf.mxu0
    %v705 = vadd.f32 0.0, %v704
    %706 = vmatmul.f32.gmra.mxu0 %v232
    %v707 = vpop.f32.mrf.mxu0
    %v708 = vadd.f32 0.0, %v707
    %709 = vmatmul.f32.gmra.mxu0 %v235
    %v710 = vpop.f32.mrf.mxu0
    %v711 = vadd.f32 0.0, %v710
    %712 = vmatmul.f32.gmra.mxu0 %v238
    %v713 = vpop.f32.mrf.mxu0
    %v714 = vadd.f32 0.0, %v713
    %715 = vmatmul.f32.gmra.mxu0 %v241
    %v716 = vpop.f32.mrf.mxu0
    %v717 = vadd.f32 0.0, %v716
    %718 = vmatmul.f32.gmra.mxu0 %v244
    %v719 = vpop.f32.mrf.mxu0
    %v720 = vadd.f32 0.0, %v719
    %721 = vmatmul.f32.gmra.mxu0 %v247
    %v722 = vpop.f32.mrf.mxu0
    %v723 = vadd.f32 0.0, %v722
    %724 = vmatmul.f32.gmra.mxu0 %v250
    %v725 = vpop.f32.mrf.mxu0
    %v726 = vadd.f32 0.0, %v725
    %727 = vmatmul.f32.gmra.mxu0 %v253
    %v728 = vpop.f32.mrf.mxu0
    %v729 = vadd.f32 0.0, %v728
    %730 = vmatmul.f32.gmra.mxu0 %v256
    %v731 = vpop.f32.mrf.mxu0
    %v732 = vadd.f32 0.0, %v731
    %733 = vmatmul.f32.gmra.mxu0 %v259
    %v734 = vpop.f32.mrf.mxu0
    %v735 = vadd.f32 0.0, %v734
    %736 = vmatmul.f32.gmra.mxu0 %v262
    %v737 = vpop.f32.mrf.mxu0
    %v738 = vadd.f32 0.0, %v737
    %739 = vmatmul.f32.gmra.mxu0 %v646
    %v740 = vpop.f32.mrf.mxu0
    %v741 = vadd.f32 0.0, %v740
    %742 = vdwg.mxu0
    %743 = vmatpush.msra.mxu0 0.0
    %744 = vmatpush.msra.mxu0 0.0
    %745 = vmatpush.msra.mxu0 0.0
    %746 = vmatpush.msra.mxu0 0.0
    %747 = vmatpush.msra.mxu0 0.0
    %748 = vmatpush.msra.mxu0 0.0
    %749 = vmatpush.msra.mxu0 0.0
    %750 = vmatpush.msra.mxu0 0.0
    %751 = vmatpush.msra.mxu0 0.0
    %752 = vmatpush.msra.mxu0 0.0
    %753 = vmatpush.msra.mxu0 0.0
    %754 = vmatpush.msra.mxu0 0.0
    %755 = vmatpush.msra.mxu0 %v652
    %756 = vmatpush.msra.mxu0 %v642
    %757 = vmatpush.msra.mxu0 %v640
    %758 = vmatpush.msra.mxu0 %v638
    %759 = vmatmul.f32.gmra.mxu0 %v196
    %v760 = vpop.f32.mrf.mxu0
    %v761 = vadd.f32 0.0, %v760
    %762 = vmatmul.f32.gmra.mxu0 %v199
    %v763 = vpop.f32.mrf.mxu0
    %v764 = vadd.f32 0.0, %v763
    %765 = vmatmul.f32.gmra.mxu0 %v202
    %v766 = vpop.f32.mrf.mxu0
    %v767 = vadd.f32 0.0, %v766
    %768 = vmatmul.f32.gmra.mxu0 %v205
    %v769 = vpop.f32.mrf.mxu0
    %v770 = vadd.f32 0.0, %v769
    %771 = vmatmul.f32.gmra.mxu0 %v208
    %v772 = vpop.f32.mrf.mxu0
    %v773 = vadd.f32 0.0, %v772
    %774 = vmatmul.f32.gmra.mxu0 %v211
    %v775 = vpop.f32.mrf.mxu0
    %v776 = vadd.f32 0.0, %v775
    %777 = vmatmul.f32.gmra.mxu0 %v214
    %v778 = vpop.f32.mrf.mxu0
    %v779 = vadd.f32 0.0, %v778
    %780 = vmatmul.f32.gmra.mxu0 %v217
    %v781 = vpop.f32.mrf.mxu0
    %v782 = vadd.f32 0.0, %v781
    %783 = vmatmul.f32.gmra.mxu0 %v220
    %v784 = vpop.f32.mrf.mxu0
    %v785 = vadd.f32 0.0, %v784
    %786 = vmatmul.f32.gmra.mxu0 %v223
    %v787 = vpop.f32.mrf.mxu0
    %v788 = vadd.f32 0.0, %v787
    %789 = vmatmul.f32.gmra.mxu0 %v226
    %v790 = vpop.f32.mrf.mxu0
    %v791 = vadd.f32 0.0, %v790
    %792 = vmatmul.f32.gmra.mxu0 %v229
    %v793 = vpop.f32.mrf.mxu0
    %v794 = vadd.f32 0.0, %v793
    %795 = vmatmul.f32.gmra.mxu0 %v232
    %v796 = vpop.f32.mrf.mxu0
    %v797 = vadd.f32 0.0, %v796
    %798 = vmatmul.f32.gmra.mxu0 %v235
    %v799 = vpop.f32.mrf.mxu0
    %v800 = vadd.f32 0.0, %v799
    %801 = vmatmul.f32.gmra.mxu0 %v238
    %v802 = vpop.f32.mrf.mxu0
    %v803 = vadd.f32 0.0, %v802
    %804 = vmatmul.f32.gmra.mxu0 %v241
    %v805 = vpop.f32.mrf.mxu0
    %v806 = vadd.f32 0.0, %v805
    %807 = vmatmul.f32.gmra.mxu0 %v244
    %v808 = vpop.f32.mrf.mxu0
    %v809 = vadd.f32 0.0, %v808
    %810 = vmatmul.f32.gmra.mxu0 %v247
    %v811 = vpop.f32.mrf.mxu0
    %v812 = vadd.f32 0.0, %v811
    %813 = vmatmul.f32.gmra.mxu0 %v250
    %v814 = vpop.f32.mrf.mxu0
    %v815 = vadd.f32 0.0, %v814
    %816 = vmatmul.f32.gmra.mxu0 %v253
    %v817 = vpop.f32.mrf.mxu0
    %v818 = vadd.f32 0.0, %v817
    %819 = vmatmul.f32.gmra.mxu0 %v256
    %v820 = vpop.f32.mrf.mxu0
    %v821 = vadd.f32 0.0, %v820
    %822 = vmatmul.f32.gmra.mxu0 %v259
    %v823 = vpop.f32.mrf.mxu0
    %v824 = vadd.f32 0.0, %v823
    %825 = vmatmul.f32.gmra.mxu0 %v262
    %v826 = vpop.f32.mrf.mxu0
    %v827 = vadd.f32 0.0, %v826
    %828 = vmatmul.f32.gmra.mxu0 %v646
    %v829 = vpop.f32.mrf.mxu0
    %v830 = vadd.f32 0.0, %v829
    %831 = vdwg.mxu0
    %v832 = vadd.f32 %v476, %v672
    %v833 = vadd.f32 %v565, %v761
    %v834 = vadd.f32 %v479, %v675
    %v835 = vadd.f32 %v568, %v764
    %v836 = vadd.f32 %v482, %v678
    %v837 = vadd.f32 %v571, %v767
    %v838 = vadd.f32 %v485, %v681
    %v839 = vadd.f32 %v574, %v770
    %v840 = vadd.f32 %v488, %v684
    %v841 = vadd.f32 %v577, %v773
    %v842 = vadd.f32 %v491, %v687
    %v843 = vadd.f32 %v580, %v776
    %v844 = vadd.f32 %v494, %v690
    %v845 = vadd.f32 %v583, %v779
    %v846 = vadd.f32 %v497, %v693
    %v847 = vadd.f32 %v586, %v782
    %v848 = vadd.f32 %v500, %v696
    %v849 = vadd.f32 %v589, %v785
    %v850 = vadd.f32 %v503, %v699
    %v851 = vadd.f32 %v592, %v788
    %v852 = vadd.f32 %v506, %v702
    %v853 = vadd.f32 %v595, %v791
    %v854 = vadd.f32 %v509, %v705
    %v855 = vadd.f32 %v598, %v794
    %v856 = vadd.f32 %v512, %v708
    %v857 = vadd.f32 %v601, %v797
    %v858 = vadd.f32 %v515, %v711
    %v859 = vadd.f32 %v604, %v800
    %v860 = vadd.f32 %v518, %v714
    %v861 = vadd.f32 %v607, %v803
    %v862 = vadd.f32 %v521, %v717
    %v863 = vadd.f32 %v610, %v806
    %v864 = vadd.f32 %v524, %v720
    %v865 = vadd.f32 %v613, %v809
    %v866 = vadd.f32 %v527, %v723
    %v867 = vadd.f32 %v616, %v812
    %v868 = vadd.f32 %v530, %v726
    %v869 = vadd.f32 %v619, %v815
    %v870 = vadd.f32 %v533, %v729
    %v871 = vadd.f32 %v622, %v818
    %v872 = vadd.f32 %v536, %v732
    %v873 = vadd.f32 %v625, %v821
    %v874 = vadd.f32 %v539, %v735
    %v875 = vadd.f32 %v628, %v824
    %v876 = vadd.f32 %v542, %v738
    %v877 = vadd.f32 %v631, %v827
    %v878 = vadd.f32 %v545, %v741
    %v879 = vadd.f32 %v634, %v830
    %s880 = scalar_lea.vmem [#allocation5], 192
    %v881 = vld [vmem:[%s880] sm:$0xff]
    %v882 = vld [vmem:[%s880 + $0x8] sm:$0xff]
    %v883 = vld [vmem:[%s880 + $0x10] sm:$0xff]
    %v884 = vld [vmem:[%s880 + $0x18] sm:$0xff]
    %v885 = vld [vmem:[%s880 + $0x20] sm:$0xff]
    %v886 = vld [vmem:[%s880 + $0x28] sm:$0xff]
    %v887 = vld [vmem:[%s880 + $0x30] sm:$0xf]
    %v888 = vld [vmem:[%s880 + $0x38] sm:$0xf]
    %v890 = vsel %vm191, %v172, 0
    %v893 = vsel %vm264, %v887, 0
    %v896 = vsel %vm264, %v888, 0
    %898 = vmatpush.msra.mxu0 0.0
    %899 = vmatpush.msra.mxu0 0.0
    %900 = vmatpush.msra.mxu0 0.0
    %901 = vmatpush.msra.mxu0 0.0
    %902 = vmatpush.msra.mxu0 0.0
    %903 = vmatpush.msra.mxu0 0.0
    %904 = vmatpush.msra.mxu0 0.0
    %905 = vmatpush.msra.mxu0 0.0
    %906 = vmatpush.msra.mxu0 0.0
    %907 = vmatpush.msra.mxu0 0.0
    %908 = vmatpush.msra.mxu0 0.0
    %909 = vmatpush.msra.mxu0 0.0
    %910 = vmatpush.msra.mxu0 %v893
    %911 = vmatpush.msra.mxu0 %v885
    %912 = vmatpush.msra.mxu0 %v883
    %913 = vmatpush.msra.mxu0 %v881
    %914 = vmatmul.f32.gmra.mxu0 %v199
    %v915 = vpop.f32.mrf.mxu0
    %v916 = vadd.f32 0.0, %v915
    %917 = vmatmul.f32.gmra.mxu0 %v202
    %v918 = vpop.f32.mrf.mxu0
    %v919 = vadd.f32 0.0, %v918
    %920 = vmatmul.f32.gmra.mxu0 %v205
    %v921 = vpop.f32.mrf.mxu0
    %v922 = vadd.f32 0.0, %v921
    %923 = vmatmul.f32.gmra.mxu0 %v208
    %v924 = vpop.f32.mrf.mxu0
    %v925 = vadd.f32 0.0, %v924
    %926 = vmatmul.f32.gmra.mxu0 %v211
    %v927 = vpop.f32.mrf.mxu0
    %v928 = vadd.f32 0.0, %v927
    %929 = vmatmul.f32.gmra.mxu0 %v214
    %v930 = vpop.f32.mrf.mxu0
    %v931 = vadd.f32 0.0, %v930
    %932 = vmatmul.f32.gmra.mxu0 %v217
    %v933 = vpop.f32.mrf.mxu0
    %v934 = vadd.f32 0.0, %v933
    %935 = vmatmul.f32.gmra.mxu0 %v220
    %v936 = vpop.f32.mrf.mxu0
    %v937 = vadd.f32 0.0, %v936
    %938 = vmatmul.f32.gmra.mxu0 %v223
    %v939 = vpop.f32.mrf.mxu0
    %v940 = vadd.f32 0.0, %v939
    %941 = vmatmul.f32.gmra.mxu0 %v226
    %v942 = vpop.f32.mrf.mxu0
    %v943 = vadd.f32 0.0, %v942
    %944 = vmatmul.f32.gmra.mxu0 %v229
    %v945 = vpop.f32.mrf.mxu0
    %v946 = vadd.f32 0.0, %v945
    %947 = vmatmul.f32.gmra.mxu0 %v232
    %v948 = vpop.f32.mrf.mxu0
    %v949 = vadd.f32 0.0, %v948
    %950 = vmatmul.f32.gmra.mxu0 %v235
    %v951 = vpop.f32.mrf.mxu0
    %v952 = vadd.f32 0.0, %v951
    %953 = vmatmul.f32.gmra.mxu0 %v238
    %v954 = vpop.f32.mrf.mxu0
    %v955 = vadd.f32 0.0, %v954
    %956 = vmatmul.f32.gmra.mxu0 %v241
    %v957 = vpop.f32.mrf.mxu0
    %v958 = vadd.f32 0.0, %v957
    %959 = vmatmul.f32.gmra.mxu0 %v244
    %v960 = vpop.f32.mrf.mxu0
    %v961 = vadd.f32 0.0, %v960
    %962 = vmatmul.f32.gmra.mxu0 %v247
    %v963 = vpop.f32.mrf.mxu0
    %v964 = vadd.f32 0.0, %v963
    %965 = vmatmul.f32.gmra.mxu0 %v250
    %v966 = vpop.f32.mrf.mxu0
    %v967 = vadd.f32 0.0, %v966
    %968 = vmatmul.f32.gmra.mxu0 %v253
    %v969 = vpop.f32.mrf.mxu0
    %v970 = vadd.f32 0.0, %v969
    %971 = vmatmul.f32.gmra.mxu0 %v256
    %v972 = vpop.f32.mrf.mxu0
    %v973 = vadd.f32 0.0, %v972
    %974 = vmatmul.f32.gmra.mxu0 %v259
    %v975 = vpop.f32.mrf.mxu0
    %v976 = vadd.f32 0.0, %v975
    %977 = vmatmul.f32.gmra.mxu0 %v262
    %v978 = vpop.f32.mrf.mxu0
    %v979 = vadd.f32 0.0, %v978
    %980 = vmatmul.f32.gmra.mxu0 %v646
    %v981 = vpop.f32.mrf.mxu0
    %v982 = vadd.f32 0.0, %v981
    %983 = vmatmul.f32.gmra.mxu0 %v890
    %v984 = vpop.f32.mrf.mxu0
    %v985 = vadd.f32 0.0, %v984
    %986 = vdwg.mxu0
    %987 = vmatpush.msra.mxu0 0.0
    %988 = vmatpush.msra.mxu0 0.0
    %989 = vmatpush.msra.mxu0 0.0
    %990 = vmatpush.msra.mxu0 0.0
    %991 = vmatpush.msra.mxu0 0.0
    %992 = vmatpush.msra.mxu0 0.0
    %993 = vmatpush.msra.mxu0 0.0
    %994 = vmatpush.msra.mxu0 0.0
    %995 = vmatpush.msra.mxu0 0.0
    %996 = vmatpush.msra.mxu0 0.0
    %997 = vmatpush.msra.mxu0 0.0
    %998 = vmatpush.msra.mxu0 0.0
    %999 = vmatpush.msra.mxu0 %v896
    %1000 = vmatpush.msra.mxu0 %v886
    %1001 = vmatpush.msra.mxu0 %v884
    %1002 = vmatpush.msra.mxu0 %v882
    %1003 = vmatmul.f32.gmra.mxu0 %v199
    %v1004 = vpop.f32.mrf.mxu0
    %v1005 = vadd.f32 0.0, %v1004
    %1006 = vmatmul.f32.gmra.mxu0 %v202
    %v1007 = vpop.f32.mrf.mxu0
    %v1008 = vadd.f32 0.0, %v1007
    %1009 = vmatmul.f32.gmra.mxu0 %v205
    %v1010 = vpop.f32.mrf.mxu0
    %v1011 = vadd.f32 0.0, %v1010
    %1012 = vmatmul.f32.gmra.mxu0 %v208
    %v1013 = vpop.f32.mrf.mxu0
    %v1014 = vadd.f32 0.0, %v1013
    %1015 = vmatmul.f32.gmra.mxu0 %v211
    %v1016 = vpop.f32.mrf.mxu0
    %v1017 = vadd.f32 0.0, %v1016
    %1018 = vmatmul.f32.gmra.mxu0 %v214
    %v1019 = vpop.f32.mrf.mxu0
    %v1020 = vadd.f32 0.0, %v1019
    %1021 = vmatmul.f32.gmra.mxu0 %v217
    %v1022 = vpop.f32.mrf.mxu0
    %v1023 = vadd.f32 0.0, %v1022
    %1024 = vmatmul.f32.gmra.mxu0 %v220
    %v1025 = vpop.f32.mrf.mxu0
    %v1026 = vadd.f32 0.0, %v1025
    %1027 = vmatmul.f32.gmra.mxu0 %v223
    %v1028 = vpop.f32.mrf.mxu0
    %v1029 = vadd.f32 0.0, %v1028
    %1030 = vmatmul.f32.gmra.mxu0 %v226
    %v1031 = vpop.f32.mrf.mxu0
    %v1032 = vadd.f32 0.0, %v1031
    %1033 = vmatmul.f32.gmra.mxu0 %v229
    %v1034 = vpop.f32.mrf.mxu0
    %v1035 = vadd.f32 0.0, %v1034
    %1036 = vmatmul.f32.gmra.mxu0 %v232
    %v1037 = vpop.f32.mrf.mxu0
    %v1038 = vadd.f32 0.0, %v1037
    %1039 = vmatmul.f32.gmra.mxu0 %v235
    %v1040 = vpop.f32.mrf.mxu0
    %v1041 = vadd.f32 0.0, %v1040
    %1042 = vmatmul.f32.gmra.mxu0 %v238
    %v1043 = vpop.f32.mrf.mxu0
    %v1044 = vadd.f32 0.0, %v1043
    %1045 = vmatmul.f32.gmra.mxu0 %v241
    %v1046 = vpop.f32.mrf.mxu0
    %v1047 = vadd.f32 0.0, %v1046
    %1048 = vmatmul.f32.gmra.mxu0 %v244
    %v1049 = vpop.f32.mrf.mxu0
    %v1050 = vadd.f32 0.0, %v1049
    %1051 = vmatmul.f32.gmra.mxu0 %v247
    %v1052 = vpop.f32.mrf.mxu0
    %v1053 = vadd.f32 0.0, %v1052
    %1054 = vmatmul.f32.gmra.mxu0 %v250
    %v1055 = vpop.f32.mrf.mxu0
    %v1056 = vadd.f32 0.0, %v1055
    %1057 = vmatmul.f32.gmra.mxu0 %v253
    %v1058 = vpop.f32.mrf.mxu0
    %v1059 = vadd.f32 0.0, %v1058
    %1060 = vmatmul.f32.gmra.mxu0 %v256
    %v1061 = vpop.f32.mrf.mxu0
    %v1062 = vadd.f32 0.0, %v1061
    %1063 = vmatmul.f32.gmra.mxu0 %v259
    %v1064 = vpop.f32.mrf.mxu0
    %v1065 = vadd.f32 0.0, %v1064
    %1066 = vmatmul.f32.gmra.mxu0 %v262
    %v1067 = vpop.f32.mrf.mxu0
    %v1068 = vadd.f32 0.0, %v1067
    %1069 = vmatmul.f32.gmra.mxu0 %v646
    %v1070 = vpop.f32.mrf.mxu0
    %v1071 = vadd.f32 0.0, %v1070
    %1072 = vmatmul.f32.gmra.mxu0 %v890
    %v1073 = vpop.f32.mrf.mxu0
    %v1074 = vadd.f32 0.0, %v1073
    %1075 = vdwg.mxu0
    %v1076 = vadd.f32 %v832, %v916
    %v1077 = vadd.f32 %v833, %v1005
    %v1078 = vadd.f32 %v834, %v919
    %v1079 = vadd.f32 %v835, %v1008
    %v1080 = vadd.f32 %v836, %v922
    %v1081 = vadd.f32 %v837, %v1011
    %v1082 = vadd.f32 %v838, %v925
    %v1083 = vadd.f32 %v839, %v1014
    %v1084 = vadd.f32 %v840, %v928
    %v1085 = vadd.f32 %v841, %v1017
    %v1086 = vadd.f32 %v842, %v931
    %v1087 = vadd.f32 %v843, %v1020
    %v1088 = vadd.f32 %v844, %v934
    %v1089 = vadd.f32 %v845, %v1023
    %v1090 = vadd.f32 %v846, %v937
    %v1091 = vadd.f32 %v847, %v1026
    %v1092 = vadd.f32 %v848, %v940
    %v1093 = vadd.f32 %v849, %v1029
    %v1094 = vadd.f32 %v850, %v943
    %v1095 = vadd.f32 %v851, %v1032
    %v1096 = vadd.f32 %v852, %v946
    %v1097 = vadd.f32 %v853, %v1035
    %v1098 = vadd.f32 %v854, %v949
    %v1099 = vadd.f32 %v855, %v1038
    %v1100 = vadd.f32 %v856, %v952
    %v1101 = vadd.f32 %v857, %v1041
    %v1102 = vadd.f32 %v858, %v955
    %v1103 = vadd.f32 %v859, %v1044
    %v1104 = vadd.f32 %v860, %v958
    %v1105 = vadd.f32 %v861, %v1047
    %v1106 = vadd.f32 %v862, %v961
    %v1107 = vadd.f32 %v863, %v1050
    %v1108 = vadd.f32 %v864, %v964
    %v1109 = vadd.f32 %v865, %v1053
    %v1110 = vadd.f32 %v866, %v967
    %v1111 = vadd.f32 %v867, %v1056
    %v1112 = vadd.f32 %v868, %v970
    %v1113 = vadd.f32 %v869, %v1059
    %v1114 = vadd.f32 %v870, %v973
    %v1115 = vadd.f32 %v871, %v1062
    %v1116 = vadd.f32 %v872, %v976
    %v1117 = vadd.f32 %v873, %v1065
    %v1118 = vadd.f32 %v874, %v979
    %v1119 = vadd.f32 %v875, %v1068
    %v1120 = vadd.f32 %v876, %v982
    %v1121 = vadd.f32 %v877, %v1071
    %v1122 = vadd.f32 %v878, %v985
    %v1123 = vadd.f32 %v879, %v1074
    %s1124 = scalar_lea.vmem [#allocation5], 256
    %v1125 = vld [vmem:[%s1124] sm:$0xff]
    %v1126 = vld [vmem:[%s1124 + $0x8] sm:$0xff]
    %v1127 = vld [vmem:[%s1124 + $0x10] sm:$0xff]
    %v1128 = vld [vmem:[%s1124 + $0x18] sm:$0xff]
    %v1129 = vld [vmem:[%s1124 + $0x20] sm:$0xff]
    %v1130 = vld [vmem:[%s1124 + $0x28] sm:$0xff]
    %v1131 = vld [vmem:[%s1124 + $0x30] sm:$0xf]
    %v1132 = vld [vmem:[%s1124 + $0x38] sm:$0xf]
    %v1134 = vsel %vm191, %v173, 0
    %v1137 = vsel %vm264, %v1131, 0
    %v1140 = vsel %vm264, %v1132, 0
    %1142 = vmatpush.msra.mxu0 0.0
    %1143 = vmatpush.msra.mxu0 0.0
    %1144 = vmatpush.msra.mxu0 0.0
    %1145 = vmatpush.msra.mxu0 0.0
    %1146 = vmatpush.msra.mxu0 0.0
    %1147 = vmatpush.msra.mxu0 0.0
    %1148 = vmatpush.msra.mxu0 0.0
    %1149 = vmatpush.msra.mxu0 0.0
    %1150 = vmatpush.msra.mxu0 0.0
    %1151 = vmatpush.msra.mxu0 0.0
    %1152 = vmatpush.msra.mxu0 0.0
    %1153 = vmatpush.msra.mxu0 0.0
    %1154 = vmatpush.msra.mxu0 %v1137
    %1155 = vmatpush.msra.mxu0 %v1129
    %1156 = vmatpush.msra.mxu0 %v1127
    %1157 = vmatpush.msra.mxu0 %v1125
    %1158 = vmatmul.f32.gmra.mxu0 %v202
    %v1159 = vpop.f32.mrf.mxu0
    %v1160 = vadd.f32 0.0, %v1159
    %1161 = vmatmul.f32.gmra.mxu0 %v205
    %v1162 = vpop.f32.mrf.mxu0
    %v1163 = vadd.f32 0.0, %v1162
    %1164 = vmatmul.f32.gmra.mxu0 %v208
    %v1165 = vpop.f32.mrf.mxu0
    %v1166 = vadd.f32 0.0, %v1165
    %1167 = vmatmul.f32.gmra.mxu0 %v211
    %v1168 = vpop.f32.mrf.mxu0
    %v1169 = vadd.f32 0.0, %v1168
    %1170 = vmatmul.f32.gmra.mxu0 %v214
    %v1171 = vpop.f32.mrf.mxu0
    %v1172 = vadd.f32 0.0, %v1171
    %1173 = vmatmul.f32.gmra.mxu0 %v217
    %v1174 = vpop.f32.mrf.mxu0
    %v1175 = vadd.f32 0.0, %v1174
    %1176 = vmatmul.f32.gmra.mxu0 %v220
    %v1177 = vpop.f32.mrf.mxu0
    %v1178 = vadd.f32 0.0, %v1177
    %1179 = vmatmul.f32.gmra.mxu0 %v223
    %v1180 = vpop.f32.mrf.mxu0
    %v1181 = vadd.f32 0.0, %v1180
    %1182 = vmatmul.f32.gmra.mxu0 %v226
    %v1183 = vpop.f32.mrf.mxu0
    %v1184 = vadd.f32 0.0, %v1183
    %1185 = vmatmul.f32.gmra.mxu0 %v229
    %v1186 = vpop.f32.mrf.mxu0
    %v1187 = vadd.f32 0.0, %v1186
    %1188 = vmatmul.f32.gmra.mxu0 %v232
    %v1189 = vpop.f32.mrf.mxu0
    %v1190 = vadd.f32 0.0, %v1189
    %1191 = vmatmul.f32.gmra.mxu0 %v235
    %v1192 = vpop.f32.mrf.mxu0
    %v1193 = vadd.f32 0.0, %v1192
    %1194 = vmatmul.f32.gmra.mxu0 %v238
    %v1195 = vpop.f32.mrf.mxu0
    %v1196 = vadd.f32 0.0, %v1195
    %1197 = vmatmul.f32.gmra.mxu0 %v241
    %v1198 = vpop.f32.mrf.mxu0
    %v1199 = vadd.f32 0.0, %v1198
    %1200 = vmatmul.f32.gmra.mxu0 %v244
    %v1201 = vpop.f32.mrf.mxu0
    %v1202 = vadd.f32 0.0, %v1201
    %1203 = vmatmul.f32.gmra.mxu0 %v247
    %v1204 = vpop.f32.mrf.mxu0
    %v1205 = vadd.f32 0.0, %v1204
    %1206 = vmatmul.f32.gmra.mxu0 %v250
    %v1207 = vpop.f32.mrf.mxu0
    %v1208 = vadd.f32 0.0, %v1207
    %1209 = vmatmul.f32.gmra.mxu0 %v253
    %v1210 = vpop.f32.mrf.mxu0
    %v1211 = vadd.f32 0.0, %v1210
    %1212 = vmatmul.f32.gmra.mxu0 %v256
    %v1213 = vpop.f32.mrf.mxu0
    %v1214 = vadd.f32 0.0, %v1213
    %1215 = vmatmul.f32.gmra.mxu0 %v259
    %v1216 = vpop.f32.mrf.mxu0
    %v1217 = vadd.f32 0.0, %v1216
    %1218 = vmatmul.f32.gmra.mxu0 %v262
    %v1219 = vpop.f32.mrf.mxu0
    %v1220 = vadd.f32 0.0, %v1219
    %1221 = vmatmul.f32.gmra.mxu0 %v646
    %v1222 = vpop.f32.mrf.mxu0
    %v1223 = vadd.f32 0.0, %v1222
    %1224 = vmatmul.f32.gmra.mxu0 %v890
    %v1225 = vpop.f32.mrf.mxu0
    %v1226 = vadd.f32 0.0, %v1225
    %1227 = vmatmul.f32.gmra.mxu0 %v1134
    %v1228 = vpop.f32.mrf.mxu0
    %v1229 = vadd.f32 0.0, %v1228
    %1230 = vdwg.mxu0
    %1231 = vmatpush.msra.mxu0 0.0
    %1232 = vmatpush.msra.mxu0 0.0
    %1233 = vmatpush.msra.mxu0 0.0
    %1234 = vmatpush.msra.mxu0 0.0
    %1235 = vmatpush.msra.mxu0 0.0
    %1236 = vmatpush.msra.mxu0 0.0
    %1237 = vmatpush.msra.mxu0 0.0
    %1238 = vmatpush.msra.mxu0 0.0
    %1239 = vmatpush.msra.mxu0 0.0
    %1240 = vmatpush.msra.mxu0 0.0
    %1241 = vmatpush.msra.mxu0 0.0
    %1242 = vmatpush.msra.mxu0 0.0
    %1243 = vmatpush.msra.mxu0 %v1140
    %1244 = vmatpush.msra.mxu0 %v1130
    %1245 = vmatpush.msra.mxu0 %v1128
    %1246 = vmatpush.msra.mxu0 %v1126
    %1247 = vmatmul.f32.gmra.mxu0 %v202
    %v1248 = vpop.f32.mrf.mxu0
    %v1249 = vadd.f32 0.0, %v1248
    %1250 = vmatmul.f32.gmra.mxu0 %v205
    %v1251 = vpop.f32.mrf.mxu0
    %v1252 = vadd.f32 0.0, %v1251
    %1253 = vmatmul.f32.gmra.mxu0 %v208
    %v1254 = vpop.f32.mrf.mxu0
    %v1255 = vadd.f32 0.0, %v1254
    %1256 = vmatmul.f32.gmra.mxu0 %v211
    %v1257 = vpop.f32.mrf.mxu0
    %v1258 = vadd.f32 0.0, %v1257
    %1259 = vmatmul.f32.gmra.mxu0 %v214
    %v1260 = vpop.f32.mrf.mxu0
    %v1261 = vadd.f32 0.0, %v1260
    %1262 = vmatmul.f32.gmra.mxu0 %v217
    %v1263 = vpop.f32.mrf.mxu0
    %v1264 = vadd.f32 0.0, %v1263
    %1265 = vmatmul.f32.gmra.mxu0 %v220
    %v1266 = vpop.f32.mrf.mxu0
    %v1267 = vadd.f32 0.0, %v1266
    %1268 = vmatmul.f32.gmra.mxu0 %v223
    %v1269 = vpop.f32.mrf.mxu0
    %v1270 = vadd.f32 0.0, %v1269
    %1271 = vmatmul.f32.gmra.mxu0 %v226
    %v1272 = vpop.f32.mrf.mxu0
    %v1273 = vadd.f32 0.0, %v1272
    %1274 = vmatmul.f32.gmra.mxu0 %v229
    %v1275 = vpop.f32.mrf.mxu0
    %v1276 = vadd.f32 0.0, %v1275
    %1277 = vmatmul.f32.gmra.mxu0 %v232
    %v1278 = vpop.f32.mrf.mxu0
    %v1279 = vadd.f32 0.0, %v1278
    %1280 = vmatmul.f32.gmra.mxu0 %v235
    %v1281 = vpop.f32.mrf.mxu0
    %v1282 = vadd.f32 0.0, %v1281
    %1283 = vmatmul.f32.gmra.mxu0 %v238
    %v1284 = vpop.f32.mrf.mxu0
    %v1285 = vadd.f32 0.0, %v1284
    %1286 = vmatmul.f32.gmra.mxu0 %v241
    %v1287 = vpop.f32.mrf.mxu0
    %v1288 = vadd.f32 0.0, %v1287
    %1289 = vmatmul.f32.gmra.mxu0 %v244
    %v1290 = vpop.f32.mrf.mxu0
    %v1291 = vadd.f32 0.0, %v1290
    %1292 = vmatmul.f32.gmra.mxu0 %v247
    %v1293 = vpop.f32.mrf.mxu0
    %v1294 = vadd.f32 0.0, %v1293
    %1295 = vmatmul.f32.gmra.mxu0 %v250
    %v1296 = vpop.f32.mrf.mxu0
    %v1297 = vadd.f32 0.0, %v1296
    %1298 = vmatmul.f32.gmra.mxu0 %v253
    %v1299 = vpop.f32.mrf.mxu0
    %v1300 = vadd.f32 0.0, %v1299
    %1301 = vmatmul.f32.gmra.mxu0 %v256
    %v1302 = vpop.f32.mrf.mxu0
    %v1303 = vadd.f32 0.0, %v1302
    %1304 = vmatmul.f32.gmra.mxu0 %v259
    %v1305 = vpop.f32.mrf.mxu0
    %v1306 = vadd.f32 0.0, %v1305
    %1307 = vmatmul.f32.gmra.mxu0 %v262
    %v1308 = vpop.f32.mrf.mxu0
    %v1309 = vadd.f32 0.0, %v1308
    %1310 = vmatmul.f32.gmra.mxu0 %v646
    %v1311 = vpop.f32.mrf.mxu0
    %v1312 = vadd.f32 0.0, %v1311
    %1313 = vmatmul.f32.gmra.mxu0 %v890
    %v1314 = vpop.f32.mrf.mxu0
    %v1315 = vadd.f32 0.0, %v1314
    %1316 = vmatmul.f32.gmra.mxu0 %v1134
    %v1317 = vpop.f32.mrf.mxu0
    %v1318 = vadd.f32 0.0, %v1317
    %1319 = vdwg.mxu0
    %v1320 = vadd.f32 %v1076, %v1160
    %v1321 = vadd.f32 %v1077, %v1249
    %v1322 = vadd.f32 %v1078, %v1163
    %v1323 = vadd.f32 %v1079, %v1252
    %v1324 = vadd.f32 %v1080, %v1166
    %v1325 = vadd.f32 %v1081, %v1255
    %v1326 = vadd.f32 %v1082, %v1169
    %v1327 = vadd.f32 %v1083, %v1258
    %v1328 = vadd.f32 %v1084, %v1172
    %v1329 = vadd.f32 %v1085, %v1261
    %v1330 = vadd.f32 %v1086, %v1175
    %v1331 = vadd.f32 %v1087, %v1264
    %v1332 = vadd.f32 %v1088, %v1178
    %v1333 = vadd.f32 %v1089, %v1267
    %v1334 = vadd.f32 %v1090, %v1181
    %v1335 = vadd.f32 %v1091, %v1270
    %v1336 = vadd.f32 %v1092, %v1184
    %v1337 = vadd.f32 %v1093, %v1273
    %v1338 = vadd.f32 %v1094, %v1187
    %v1339 = vadd.f32 %v1095, %v1276
    %v1340 = vadd.f32 %v1096, %v1190
    %v1341 = vadd.f32 %v1097, %v1279
    %v1342 = vadd.f32 %v1098, %v1193
    %v1343 = vadd.f32 %v1099, %v1282
    %v1344 = vadd.f32 %v1100, %v1196
    %v1345 = vadd.f32 %v1101, %v1285
    %v1346 = vadd.f32 %v1102, %v1199
    %v1347 = vadd.f32 %v1103, %v1288
    %v1348 = vadd.f32 %v1104, %v1202
    %v1349 = vadd.f32 %v1105, %v1291
    %v1350 = vadd.f32 %v1106, %v1205
    %v1351 = vadd.f32 %v1107, %v1294
    %v1352 = vadd.f32 %v1108, %v1208
    %v1353 = vadd.f32 %v1109, %v1297
    %v1354 = vadd.f32 %v1110, %v1211
    %v1355 = vadd.f32 %v1111, %v1300
    %v1356 = vadd.f32 %v1112, %v1214
    %v1357 = vadd.f32 %v1113, %v1303
    %v1358 = vadd.f32 %v1114, %v1217
    %v1359 = vadd.f32 %v1115, %v1306
    %v1360 = vadd.f32 %v1116, %v1220
    %v1361 = vadd.f32 %v1117, %v1309
    %v1362 = vadd.f32 %v1118, %v1223
    %v1363 = vadd.f32 %v1119, %v1312
    %v1364 = vadd.f32 %v1120, %v1226
    %v1365 = vadd.f32 %v1121, %v1315
    %v1366 = vadd.f32 %v1122, %v1229
    %v1367 = vadd.f32 %v1123, %v1318
    %v1368 = vld [vmem:[#allocation7] sm:$0x3]
    %v1370 = vperm.slane %v1368, 0
    %v1371 = vperm.slane %v1368, 1
    %v1374 = vadd.f32 %v1320, %v1370
    %v1375 = vadd.f32 %v1321, %v1371
    %v1376 = vadd.f32 %v1322, %v1370
    %v1377 = vadd.f32 %v1323, %v1371
    %v1378 = vadd.f32 %v1324, %v1370
    %v1379 = vadd.f32 %v1325, %v1371
    %v1380 = vadd.f32 %v1326, %v1370
    %v1381 = vadd.f32 %v1327, %v1371
    %v1382 = vadd.f32 %v1328, %v1370
    %v1383 = vadd.f32 %v1329, %v1371
    %v1384 = vadd.f32 %v1330, %v1370
    %v1385 = vadd.f32 %v1331, %v1371
    %v1386 = vadd.f32 %v1332, %v1370
    %v1387 = vadd.f32 %v1333, %v1371
    %v1388 = vadd.f32 %v1334, %v1370
    %v1389 = vadd.f32 %v1335, %v1371
    %v1390 = vadd.f32 %v1336, %v1370
    %v1391 = vadd.f32 %v1337, %v1371
    %v1392 = vadd.f32 %v1338, %v1370
    %v1393 = vadd.f32 %v1339, %v1371
    %v1394 = vadd.f32 %v1340, %v1370
    %v1395 = vadd.f32 %v1341, %v1371
    %v1396 = vadd.f32 %v1342, %v1370
    %v1397 = vadd.f32 %v1343, %v1371
    %v1398 = vadd.f32 %v1344, %v1370
    %v1399 = vadd.f32 %v1345, %v1371
    %v1400 = vadd.f32 %v1346, %v1370
    %v1401 = vadd.f32 %v1347, %v1371
    %v1402 = vadd.f32 %v1348, %v1370
    %v1403 = vadd.f32 %v1349, %v1371
    %v1404 = vadd.f32 %v1350, %v1370
    %v1405 = vadd.f32 %v1351, %v1371
    %v1406 = vadd.f32 %v1352, %v1370
    %v1407 = vadd.f32 %v1353, %v1371
    %v1408 = vadd.f32 %v1354, %v1370
    %v1409 = vadd.f32 %v1355, %v1371
    %v1410 = vadd.f32 %v1356, %v1370
    %v1411 = vadd.f32 %v1357, %v1371
    %v1412 = vadd.f32 %v1358, %v1370
    %v1413 = vadd.f32 %v1359, %v1371
    %v1414 = vadd.f32 %v1360, %v1370
    %v1415 = vadd.f32 %v1361, %v1371
    %v1416 = vadd.f32 %v1362, %v1370
    %v1417 = vadd.f32 %v1363, %v1371
    %v1418 = vadd.f32 %v1364, %v1370
    %v1419 = vadd.f32 %v1365, %v1371
    %v1420 = vadd.f32 %v1366, %v1370
    %v1421 = vadd.f32 %v1367, %v1371
    %v1422 = vmax.f32 %v1374, 0.0
    %v1423 = vmax.f32 %v1375, 0.0
    %v1424 = vmax.f32 %v1376, 0.0
    %v1425 = vmax.f32 %v1377, 0.0
    %v1426 = vmax.f32 %v1378, 0.0
    %v1427 = vmax.f32 %v1379, 0.0
    %v1428 = vmax.f32 %v1380, 0.0
    %v1429 = vmax.f32 %v1381, 0.0
    %v1430 = vmax.f32 %v1382, 0.0
    %v1431 = vmax.f32 %v1383, 0.0
    %v1432 = vmax.f32 %v1384, 0.0
    %v1433 = vmax.f32 %v1385, 0.0
    %v1434 = vmax.f32 %v1386, 0.0
    %v1435 = vmax.f32 %v1387, 0.0
    %v1436 = vmax.f32 %v1388, 0.0
    %v1437 = vmax.f32 %v1389, 0.0
    %v1438 = vmax.f32 %v1390, 0.0
    %v1439 = vmax.f32 %v1391, 0.0
    %v1440 = vmax.f32 %v1392, 0.0
    %v1441 = vmax.f32 %v1393, 0.0
    %v1442 = vmax.f32 %v1394, 0.0
    %v1443 = vmax.f32 %v1395, 0.0
    %v1444 = vmax.f32 %v1396, 0.0
    %v1445 = vmax.f32 %v1397, 0.0
    %v1446 = vmax.f32 %v1398, 0.0
    %v1447 = vmax.f32 %v1399, 0.0
    %v1448 = vmax.f32 %v1400, 0.0
    %v1449 = vmax.f32 %v1401, 0.0
    %v1450 = vmax.f32 %v1402, 0.0
    %v1451 = vmax.f32 %v1403, 0.0
    %v1452 = vmax.f32 %v1404, 0.0
    %v1453 = vmax.f32 %v1405, 0.0
    %v1454 = vmax.f32 %v1406, 0.0
    %v1455 = vmax.f32 %v1407, 0.0
    %v1456 = vmax.f32 %v1408, 0.0
    %v1457 = vmax.f32 %v1409, 0.0
    %v1458 = vmax.f32 %v1410, 0.0
    %v1459 = vmax.f32 %v1411, 0.0
    %v1460 = vmax.f32 %v1412, 0.0
    %v1461 = vmax.f32 %v1413, 0.0
    %v1462 = vmax.f32 %v1414, 0.0
    %v1463 = vmax.f32 %v1415, 0.0
    %v1464 = vmax.f32 %v1416, 0.0
    %v1465 = vmax.f32 %v1417, 0.0
    %v1466 = vmax.f32 %v1418, 0.0
    %v1467 = vmax.f32 %v1419, 0.0
    %v1468 = vmax.f32 %v1420, 0.0
    %v1469 = vmax.f32 %v1421, 0.0
    %v1470 = vmax.f32 %v1422, %v1424
    %v1471 = vmax.f32 %v1423, %v1425
    %v1472 = vmax.f32 %v1426, %v1428
    %v1473 = vmax.f32 %v1427, %v1429
    %v1474 = vmax.f32 %v1430, %v1432
    %v1475 = vmax.f32 %v1431, %v1433
    %v1476 = vmax.f32 %v1434, %v1436
    %v1477 = vmax.f32 %v1435, %v1437
    %v1478 = vmax.f32 %v1438, %v1440
    %v1479 = vmax.f32 %v1439, %v1441
    %v1480 = vmax.f32 %v1442, %v1444
    %v1481 = vmax.f32 %v1443, %v1445
    %v1482 = vmax.f32 %v1446, %v1448
    %v1483 = vmax.f32 %v1447, %v1449
    %v1484 = vmax.f32 %v1450, %v1452
    %v1485 = vmax.f32 %v1451, %v1453
    %v1486 = vmax.f32 %v1454, %v1456
    %v1487 = vmax.f32 %v1455, %v1457
    %v1488 = vmax.f32 %v1458, %v1460
    %v1489 = vmax.f32 %v1459, %v1461
    %v1490 = vmax.f32 %v1462, %v1464
    %v1491 = vmax.f32 %v1463, %v1465
    %v1492 = vmax.f32 %v1466, %v1468
    %v1493 = vmax.f32 %v1467, %v1469
    %1518 = vrot.lane.b32.xlu0 %v1470, 122
    %v1519 = vpop.permute.xlu0 %1518
    %1520 = vrot.lane.b32.xlu0 %v1471, 122
    %v1521 = vpop.permute.xlu0 %1520
    %1522 = vrot.lane.b32.xlu0 %v1472, 122
    %v1523 = vpop.permute.xlu0 %1522
    %1524 = vrot.lane.b32.xlu0 %v1473, 122
    %v1525 = vpop.permute.xlu0 %1524
    %1526 = vrot.lane.b32.xlu0 %v1474, 122
    %v1527 = vpop.permute.xlu0 %1526
    %1528 = vrot.lane.b32.xlu0 %v1475, 122
    %v1529 = vpop.permute.xlu0 %1528
    %1530 = vrot.lane.b32.xlu0 %v1476, 122
    %v1531 = vpop.permute.xlu0 %1530
    %1532 = vrot.lane.b32.xlu0 %v1477, 122
    %v1533 = vpop.permute.xlu0 %1532
    %1534 = vrot.lane.b32.xlu0 %v1478, 122
    %v1535 = vpop.permute.xlu0 %1534
    %1536 = vrot.lane.b32.xlu0 %v1479, 122
    %v1537 = vpop.permute.xlu0 %1536
    %1538 = vrot.lane.b32.xlu0 %v1480, 122
    %v1539 = vpop.permute.xlu0 %1538
    %1540 = vrot.lane.b32.xlu0 %v1481, 122
    %v1541 = vpop.permute.xlu0 %1540
    %1542 = vrot.lane.b32.xlu0 %v1482, 122
    %v1543 = vpop.permute.xlu0 %1542
    %1544 = vrot.lane.b32.xlu0 %v1483, 122
    %v1545 = vpop.permute.xlu0 %1544
    %1546 = vrot.lane.b32.xlu0 %v1484, 122
    %v1547 = vpop.permute.xlu0 %1546
    %1548 = vrot.lane.b32.xlu0 %v1485, 122
    %v1549 = vpop.permute.xlu0 %1548
    %1550 = vrot.lane.b32.xlu0 %v1486, 122
    %v1551 = vpop.permute.xlu0 %1550
    %1552 = vrot.lane.b32.xlu0 %v1487, 122
    %v1553 = vpop.permute.xlu0 %1552
    %1554 = vrot.lane.b32.xlu0 %v1488, 122
    %v1555 = vpop.permute.xlu0 %1554
    %1556 = vrot.lane.b32.xlu0 %v1489, 122
    %v1557 = vpop.permute.xlu0 %1556
    %1558 = vrot.lane.b32.xlu0 %v1490, 122
    %v1559 = vpop.permute.xlu0 %1558
    %1560 = vrot.lane.b32.xlu0 %v1491, 122
    %v1561 = vpop.permute.xlu0 %1560
    %1562 = vrot.lane.b32.xlu0 %v1492, 122
    %v1563 = vpop.permute.xlu0 %1562
    %1564 = vrot.lane.b32.xlu0 %v1493, 122
    %v1565 = vpop.permute.xlu0 %1564
    %vm1566 = vcmask 998400
    %v1567 = vsel %vm1566, %v1519, %v1521
    %v1568 = vsel %vm1566, %v1523, %v1525
    %v1569 = vsel %vm1566, %v1527, %v1529
    %v1570 = vsel %vm1566, %v1531, %v1533
    %v1571 = vsel %vm1566, %v1535, %v1537
    %v1572 = vsel %vm1566, %v1539, %v1541
    %v1573 = vsel %vm1566, %v1543, %v1545
    %v1574 = vsel %vm1566, %v1547, %v1549
    %v1575 = vsel %vm1566, %v1551, %v1553
    %v1576 = vsel %vm1566, %v1555, %v1557
    %v1577 = vsel %vm1566, %v1559, %v1561
    %v1578 = vsel %vm1566, %v1563, %v1565
    %v1603 = vmax.f32 %v1470, %v1567
    %v1604 = vmax.f32 %v1471, %v1521
    %v1605 = vmax.f32 %v1472, %v1568
    %v1606 = vmax.f32 %v1473, %v1525
    %v1607 = vmax.f32 %v1474, %v1569
    %v1608 = vmax.f32 %v1475, %v1529
    %v1609 = vmax.f32 %v1476, %v1570
    %v1610 = vmax.f32 %v1477, %v1533
    %v1611 = vmax.f32 %v1478, %v1571
    %v1612 = vmax.f32 %v1479, %v1537
    %v1613 = vmax.f32 %v1480, %v1572
    %v1614 = vmax.f32 %v1481, %v1541
    %v1615 = vmax.f32 %v1482, %v1573
    %v1616 = vmax.f32 %v1483, %v1545
    %v1617 = vmax.f32 %v1484, %v1574
    %v1618 = vmax.f32 %v1485, %v1549
    %v1619 = vmax.f32 %v1486, %v1575
    %v1620 = vmax.f32 %v1487, %v1553
    %v1621 = vmax.f32 %v1488, %v1576
    %v1622 = vmax.f32 %v1489, %v1557
    %v1623 = vmax.f32 %v1490, %v1577
    %v1624 = vmax.f32 %v1491, %v1561
    %v1625 = vmax.f32 %v1492, %v1578
    %v1626 = vmax.f32 %v1493, %v1565
    %v1627 = vld [vmem:[#allocation8] sm:$0xff]
    %v1628 = vld [vmem:[#allocation8 + $0x8] sm:$0xff]
    %v1629 = vld [vmem:[#allocation8 + $0x10] sm:$0xff]
    %v1630 = vld [vmem:[#allocation8 + $0x18] sm:$0xff]
    %v1631 = vld [vmem:[#allocation8 + $0x20] sm:$0xff]
    %v1632 = vld [vmem:[#allocation8 + $0x28] sm:$0xff]
    %v1633 = vld [vmem:[#allocation8 + $0x30] sm:$0xff]
    %v1634 = vld [vmem:[#allocation8 + $0x38] sm:$0xff]
    %v1635 = vld [vmem:[#allocation8 + $0x40] sm:$0xff]
    %v1636 = vld [vmem:[#allocation8 + $0x48] sm:$0xff]
    %v1637 = vld [vmem:[#allocation8 + $0x50] sm:$0xff]
    %v1638 = vld [vmem:[#allocation8 + $0x58] sm:$0xff]
    %v1639 = vld [vmem:[#allocation8 + $0x60] sm:$0xff]
    %v1640 = vld [vmem:[#allocation8 + $0x68] sm:$0xff]
    %v1641 = vld [vmem:[#allocation8 + $0x70] sm:$0xff]
    %v1642 = vld [vmem:[#allocation8 + $0x78] sm:$0xff]
    %v1643 = vld [vmem:[#allocation8 + $0x80] sm:$0xff]
    %v1644 = vld [vmem:[#allocation8 + $0x88] sm:$0x3]
    %s1645 = scalar_lea.vmem [#allocation8], 144
    %v1646 = vld [vmem:[%s1645] sm:$0xff]
    %v1647 = vld [vmem:[%s1645 + $0x8] sm:$0xff]
    %v1648 = vld [vmem:[%s1645 + $0x10] sm:$0xff]
    %v1649 = vld [vmem:[%s1645 + $0x18] sm:$0xff]
    %v1650 = vld [vmem:[%s1645 + $0x20] sm:$0xff]
    %v1651 = vld [vmem:[%s1645 + $0x28] sm:$0xff]
    %v1652 = vld [vmem:[%s1645 + $0x30] sm:$0xff]
    %v1653 = vld [vmem:[%s1645 + $0x38] sm:$0xff]
    %v1654 = vld [vmem:[%s1645 + $0x40] sm:$0xff]
    %v1655 = vld [vmem:[%s1645 + $0x48] sm:$0xff]
    %v1656 = vld [vmem:[%s1645 + $0x50] sm:$0xff]
    %v1657 = vld [vmem:[%s1645 + $0x58] sm:$0xff]
    %v1658 = vld [vmem:[%s1645 + $0x60] sm:$0xff]
    %v1659 = vld [vmem:[%s1645 + $0x68] sm:$0xff]
    %v1660 = vld [vmem:[%s1645 + $0x70] sm:$0xff]
    %v1661 = vld [vmem:[%s1645 + $0x78] sm:$0xff]
    %v1662 = vld [vmem:[%s1645 + $0x80] sm:$0xff]
    %v1663 = vld [vmem:[%s1645 + $0x88] sm:$0x3]
    %vm1664 = vcmask 80896
    %v1666 = vsel %vm1664, %v1606, 0
    %v1669 = vsel %vm1664, %v1608, 0
    %v1672 = vsel %vm1664, %v1610, 0
    %v1675 = vsel %vm1664, %v1612, 0
    %v1678 = vsel %vm1664, %v1614, 0
    %v1681 = vsel %vm1664, %v1616, 0
    %v1684 = vsel %vm1664, %v1618, 0
    %v1687 = vsel %vm1664, %v1620, 0
    %vm1689 = vcmask 1041408
    %v1691 = vsel %vm1689, %v1663, 0
    %1693 = vmatpush.msra.mxu0 %v1661
    %1694 = vmatpush.msra.mxu0 %v1660
    %1695 = vmatpush.msra.mxu0 %v1659
    %1696 = vmatpush.msra.mxu0 %v1658
    %1697 = vmatpush.msra.mxu0 %v1657
    %1698 = vmatpush.msra.mxu0 %v1656
    %1699 = vmatpush.msra.mxu0 %v1655
    %1700 = vmatpush.msra.mxu0 %v1654
    %1701 = vmatpush.msra.mxu0 %v1653
    %1702 = vmatpush.msra.mxu0 %v1652
    %1703 = vmatpush.msra.mxu0 %v1651
    %1704 = vmatpush.msra.mxu0 %v1650
    %1705 = vmatpush.msra.mxu0 %v1649
    %1706 = vmatpush.msra.mxu0 %v1648
    %1707 = vmatpush.msra.mxu0 %v1647
    %1708 = vmatpush.msra.mxu0 %v1646
    %1709 = vmatmul.f32.gmra.mxu0 %v1605
    %v1710 = vpop.f32.mrf.mxu0
    %v1711 = vadd.f32 0.0, %v1710
    %1712 = vmatmul.f32.gmra.mxu0 %v1607
    %v1713 = vpop.f32.mrf.mxu0
    %v1714 = vadd.f32 0.0, %v1713
    %1715 = vmatmul.f32.gmra.mxu0 %v1609
    %v1716 = vpop.f32.mrf.mxu0
    %v1717 = vadd.f32 0.0, %v1716
    %1718 = vmatmul.f32.gmra.mxu0 %v1611
    %v1719 = vpop.f32.mrf.mxu0
    %v1720 = vadd.f32 0.0, %v1719
    %1721 = vmatmul.f32.gmra.mxu0 %v1613
    %v1722 = vpop.f32.mrf.mxu0
    %v1723 = vadd.f32 0.0, %v1722
    %1724 = vmatmul.f32.gmra.mxu0 %v1615
    %v1725 = vpop.f32.mrf.mxu0
    %v1726 = vadd.f32 0.0, %v1725
    %1727 = vmatmul.f32.gmra.mxu0 %v1617
    %v1728 = vpop.f32.mrf.mxu0
    %v1729 = vadd.f32 0.0, %v1728
    %1730 = vmatmul.f32.gmra.mxu0 %v1619
    %v1731 = vpop.f32.mrf.mxu0
    %v1732 = vadd.f32 0.0, %v1731
    %1733 = vdwg.mxu0
    %1734 = vmatpush.msra.mxu0 0.0
    %1735 = vmatpush.msra.mxu0 0.0
    %1736 = vmatpush.msra.mxu0 0.0
    %1737 = vmatpush.msra.mxu0 0.0
    %1738 = vmatpush.msra.mxu0 0.0
    %1739 = vmatpush.msra.mxu0 0.0
    %1740 = vmatpush.msra.mxu0 0.0
    %1741 = vmatpush.msra.mxu0 0.0
    %1742 = vmatpush.msra.mxu0 0.0
    %1743 = vmatpush.msra.mxu0 0.0
    %1744 = vmatpush.msra.mxu0 0.0
    %1745 = vmatpush.msra.mxu0 0.0
    %1746 = vmatpush.msra.mxu0 0.0
    %1747 = vmatpush.msra.mxu0 0.0
    %1748 = vmatpush.msra.mxu0 %v1691
    %1749 = vmatpush.msra.mxu0 %v1662
    %1750 = vmatmul.f32.gmra.mxu0 %v1666
    %v1751 = vpop.f32.mrf.mxu0
    %v1752 = vadd.f32 %v1711, %v1751
    %1753 = vmatmul.f32.gmra.mxu0 %v1669
    %v1754 = vpop.f32.mrf.mxu0
    %v1755 = vadd.f32 %v1714, %v1754
    %1756 = vmatmul.f32.gmra.mxu0 %v1672
    %v1757 = vpop.f32.mrf.mxu0
    %v1758 = vadd.f32 %v1717, %v1757
    %1759 = vmatmul.f32.gmra.mxu0 %v1675
    %v1760 = vpop.f32.mrf.mxu0
    %v1761 = vadd.f32 %v1720, %v1760
    %1762 = vmatmul.f32.gmra.mxu0 %v1678
    %v1763 = vpop.f32.mrf.mxu0
    %v1764 = vadd.f32 %v1723, %v1763
    %1765 = vmatmul.f32.gmra.mxu0 %v1681
    %v1766 = vpop.f32.mrf.mxu0
    %v1767 = vadd.f32 %v1726, %v1766
    %1768 = vmatmul.f32.gmra.mxu0 %v1684
    %v1769 = vpop.f32.mrf.mxu0
    %v1770 = vadd.f32 %v1729, %v1769
    %1771 = vmatmul.f32.gmra.mxu0 %v1687
    %v1772 = vpop.f32.mrf.mxu0
    %v1773 = vadd.f32 %v1732, %v1772
    %1774 = vdwg.mxu0
    %v1776 = vsel %vm1664, %v1604, 0
    %v1779 = vsel %vm1689, %v1644, 0
    %1781 = vmatpush.msra.mxu0 %v1642
    %1782 = vmatpush.msra.mxu0 %v1641
    %1783 = vmatpush.msra.mxu0 %v1640
    %1784 = vmatpush.msra.mxu0 %v1639
    %1785 = vmatpush.msra.mxu0 %v1638
    %1786 = vmatpush.msra.mxu0 %v1637
    %1787 = vmatpush.msra.mxu0 %v1636
    %1788 = vmatpush.msra.mxu0 %v1635
    %1789 = vmatpush.msra.mxu0 %v1634
    %1790 = vmatpush.msra.mxu0 %v1633
    %1791 = vmatpush.msra.mxu0 %v1632
    %1792 = vmatpush.msra.mxu0 %v1631
    %1793 = vmatpush.msra.mxu0 %v1630
    %1794 = vmatpush.msra.mxu0 %v1629
    %1795 = vmatpush.msra.mxu0 %v1628
    %1796 = vmatpush.msra.mxu0 %v1627
    %1797 = vmatmul.f32.gmra.mxu0 %v1603
    %v1798 = vpop.f32.mrf.mxu0
    %v1799 = vadd.f32 %v1752, %v1798
    %1800 = vmatmul.f32.gmra.mxu0 %v1605
    %v1801 = vpop.f32.mrf.mxu0
    %v1802 = vadd.f32 %v1755, %v1801
    %1803 = vmatmul.f32.gmra.mxu0 %v1607
    %v1804 = vpop.f32.mrf.mxu0
    %v1805 = vadd.f32 %v1758, %v1804
    %1806 = vmatmul.f32.gmra.mxu0 %v1609
    %v1807 = vpop.f32.mrf.mxu0
    %v1808 = vadd.f32 %v1761, %v1807
    %1809 = vmatmul.f32.gmra.mxu0 %v1611
    %v1810 = vpop.f32.mrf.mxu0
    %v1811 = vadd.f32 %v1764, %v1810
    %1812 = vmatmul.f32.gmra.mxu0 %v1613
    %v1813 = vpop.f32.mrf.mxu0
    %v1814 = vadd.f32 %v1767, %v1813
    %1815 = vmatmul.f32.gmra.mxu0 %v1615
    %v1816 = vpop.f32.mrf.mxu0
    %v1817 = vadd.f32 %v1770, %v1816
    %1818 = vmatmul.f32.gmra.mxu0 %v1617
    %v1819 = vpop.f32.mrf.mxu0
    %v1820 = vadd.f32 %v1773, %v1819
    %1821 = vdwg.mxu0
    %1822 = vmatpush.msra.mxu0 0.0
    %1823 = vmatpush.msra.mxu0 0.0
    %1824 = vmatpush.msra.mxu0 0.0
    %1825 = vmatpush.msra.mxu0 0.0
    %1826 = vmatpush.msra.mxu0 0.0
    %1827 = vmatpush.msra.mxu0 0.0
    %1828 = vmatpush.msra.mxu0 0.0
    %1829 = vmatpush.msra.mxu0 0.0
    %1830 = vmatpush.msra.mxu0 0.0
    %1831 = vmatpush.msra.mxu0 0.0
    %1832 = vmatpush.msra.mxu0 0.0
    %1833 = vmatpush.msra.mxu0 0.0
    %1834 = vmatpush.msra.mxu0 0.0
    %1835 = vmatpush.msra.mxu0 0.0
    %1836 = vmatpush.msra.mxu0 %v1779
    %1837 = vmatpush.msra.mxu0 %v1643
    %1838 = vmatmul.f32.gmra.mxu0 %v1776
    %v1839 = vpop.f32.mrf.mxu0
    %v1840 = vadd.f32 %v1799, %v1839
    %1841 = vmatmul.f32.gmra.mxu0 %v1666
    %v1842 = vpop.f32.mrf.mxu0
    %v1843 = vadd.f32 %v1802, %v1842
    %1844 = vmatmul.f32.gmra.mxu0 %v1669
    %v1845 = vpop.f32.mrf.mxu0
    %v1846 = vadd.f32 %v1805, %v1845
    %1847 = vmatmul.f32.gmra.mxu0 %v1672
    %v1848 = vpop.f32.mrf.mxu0
    %v1849 = vadd.f32 %v1808, %v1848
    %1850 = vmatmul.f32.gmra.mxu0 %v1675
    %v1851 = vpop.f32.mrf.mxu0
    %v1852 = vadd.f32 %v1811, %v1851
    %1853 = vmatmul.f32.gmra.mxu0 %v1678
    %v1854 = vpop.f32.mrf.mxu0
    %v1855 = vadd.f32 %v1814, %v1854
    %1856 = vmatmul.f32.gmra.mxu0 %v1681
    %v1857 = vpop.f32.mrf.mxu0
    %v1858 = vadd.f32 %v1817, %v1857
    %1859 = vmatmul.f32.gmra.mxu0 %v1684
    %v1860 = vpop.f32.mrf.mxu0
    %v1861 = vadd.f32 %v1820, %v1860
    %1862 = vdwg.mxu0
    %s1863 = scalar_lea.vmem [#allocation8], 288
    %v1864 = vld [vmem:[%s1863] sm:$0xff]
    %v1865 = vld [vmem:[%s1863 + $0x8] sm:$0xff]
    %v1866 = vld [vmem:[%s1863 + $0x10] sm:$0xff]
    %v1867 = vld [vmem:[%s1863 + $0x18] sm:$0xff]
    %v1868 = vld [vmem:[%s1863 + $0x20] sm:$0xff]
    %v1869 = vld [vmem:[%s1863 + $0x28] sm:$0xff]
    %v1870 = vld [vmem:[%s1863 + $0x30] sm:$0xff]
    %v1871 = vld [vmem:[%s1863 + $0x38] sm:$0xff]
    %v1872 = vld [vmem:[%s1863 + $0x40] sm:$0xff]
    %v1873 = vld [vmem:[%s1863 + $0x48] sm:$0xff]
    %v1874 = vld [vmem:[%s1863 + $0x50] sm:$0xff]
    %v1875 = vld [vmem:[%s1863 + $0x58] sm:$0xff]
    %v1876 = vld [vmem:[%s1863 + $0x60] sm:$0xff]
    %v1877 = vld [vmem:[%s1863 + $0x68] sm:$0xff]
    %v1878 = vld [vmem:[%s1863 + $0x70] sm:$0xff]
    %v1879 = vld [vmem:[%s1863 + $0x78] sm:$0xff]
    %v1880 = vld [vmem:[%s1863 + $0x80] sm:$0xff]
    %v1881 = vld [vmem:[%s1863 + $0x88] sm:$0x3]
    %v1883 = vsel %vm1664, %v1622, 0
    %v1886 = vsel %vm1689, %v1881, 0
    %1888 = vmatpush.msra.mxu0 %v1879
    %1889 = vmatpush.msra.mxu0 %v1878
    %1890 = vmatpush.msra.mxu0 %v1877
    %1891 = vmatpush.msra.mxu0 %v1876
    %1892 = vmatpush.msra.mxu0 %v1875
    %1893 = vmatpush.msra.mxu0 %v1874
    %1894 = vmatpush.msra.mxu0 %v1873
    %1895 = vmatpush.msra.mxu0 %v1872
    %1896 = vmatpush.msra.mxu0 %v1871
    %1897 = vmatpush.msra.mxu0 %v1870
    %1898 = vmatpush.msra.mxu0 %v1869
    %1899 = vmatpush.msra.mxu0 %v1868
    %1900 = vmatpush.msra.mxu0 %v1867
    %1901 = vmatpush.msra.mxu0 %v1866
    %1902 = vmatpush.msra.mxu0 %v1865
    %1903 = vmatpush.msra.mxu0 %v1864
    %1904 = vmatmul.f32.gmra.mxu0 %v1607
    %v1905 = vpop.f32.mrf.mxu0
    %v1906 = vadd.f32 0.0, %v1905
    %1907 = vmatmul.f32.gmra.mxu0 %v1609
    %v1908 = vpop.f32.mrf.mxu0
    %v1909 = vadd.f32 0.0, %v1908
    %1910 = vmatmul.f32.gmra.mxu0 %v1611
    %v1911 = vpop.f32.mrf.mxu0
    %v1912 = vadd.f32 0.0, %v1911
    %1913 = vmatmul.f32.gmra.mxu0 %v1613
    %v1914 = vpop.f32.mrf.mxu0
    %v1915 = vadd.f32 0.0, %v1914
    %1916 = vmatmul.f32.gmra.mxu0 %v1615
    %v1917 = vpop.f32.mrf.mxu0
    %v1918 = vadd.f32 0.0, %v1917
    %1919 = vmatmul.f32.gmra.mxu0 %v1617
    %v1920 = vpop.f32.mrf.mxu0
    %v1921 = vadd.f32 0.0, %v1920
    %1922 = vmatmul.f32.gmra.mxu0 %v1619
    %v1923 = vpop.f32.mrf.mxu0
    %v1924 = vadd.f32 0.0, %v1923
    %1925 = vmatmul.f32.gmra.mxu0 %v1621
    %v1926 = vpop.f32.mrf.mxu0
    %v1927 = vadd.f32 0.0, %v1926
    %1928 = vdwg.mxu0
    %1929 = vmatpush.msra.mxu0 0.0
    %1930 = vmatpush.msra.mxu0 0.0
    %1931 = vmatpush.msra.mxu0 0.0
    %1932 = vmatpush.msra.mxu0 0.0
    %1933 = vmatpush.msra.mxu0 0.0
    %1934 = vmatpush.msra.mxu0 0.0
    %1935 = vmatpush.msra.mxu0 0.0
    %1936 = vmatpush.msra.mxu0 0.0
    %1937 = vmatpush.msra.mxu0 0.0
    %1938 = vmatpush.msra.mxu0 0.0
    %1939 = vmatpush.msra.mxu0 0.0
    %1940 = vmatpush.msra.mxu0 0.0
    %1941 = vmatpush.msra.mxu0 0.0
    %1942 = vmatpush.msra.mxu0 0.0
    %1943 = vmatpush.msra.mxu0 %v1886
    %1944 = vmatpush.msra.mxu0 %v1880
    %1945 = vmatmul.f32.gmra.mxu0 %v1669
    %v1946 = vpop.f32.mrf.mxu0
    %v1947 = vadd.f32 %v1906, %v1946
    %1948 = vmatmul.f32.gmra.mxu0 %v1672
    %v1949 = vpop.f32.mrf.mxu0
    %v1950 = vadd.f32 %v1909, %v1949
    %1951 = vmatmul.f32.gmra.mxu0 %v1675
    %v1952 = vpop.f32.mrf.mxu0
    %v1953 = vadd.f32 %v1912, %v1952
    %1954 = vmatmul.f32.gmra.mxu0 %v1678
    %v1955 = vpop.f32.mrf.mxu0
    %v1956 = vadd.f32 %v1915, %v1955
    %1957 = vmatmul.f32.gmra.mxu0 %v1681
    %v1958 = vpop.f32.mrf.mxu0
    %v1959 = vadd.f32 %v1918, %v1958
    %1960 = vmatmul.f32.gmra.mxu0 %v1684
    %v1961 = vpop.f32.mrf.mxu0
    %v1962 = vadd.f32 %v1921, %v1961
    %1963 = vmatmul.f32.gmra.mxu0 %v1687
    %v1964 = vpop.f32.mrf.mxu0
    %v1965 = vadd.f32 %v1924, %v1964
    %1966 = vmatmul.f32.gmra.mxu0 %v1883
    %v1967 = vpop.f32.mrf.mxu0
    %v1968 = vadd.f32 %v1927, %v1967
    %1969 = vdwg.mxu0
    %v1970 = vadd.f32 %v1840, %v1947
    %v1971 = vadd.f32 %v1843, %v1950
    %v1972 = vadd.f32 %v1846, %v1953
    %v1973 = vadd.f32 %v1849, %v1956
    %v1974 = vadd.f32 %v1852, %v1959
    %v1975 = vadd.f32 %v1855, %v1962
    %v1976 = vadd.f32 %v1858, %v1965
    %v1977 = vadd.f32 %v1861, %v1968
    %s1978 = scalar_lea.vmem [#allocation8], 432
    %v1979 = vld [vmem:[%s1978] sm:$0xff]
    %v1980 = vld [vmem:[%s1978 + $0x8] sm:$0xff]
    %v1981 = vld [vmem:[%s1978 + $0x10] sm:$0xff]
    %v1982 = vld [vmem:[%s1978 + $0x18] sm:$0xff]
    %v1983 = vld [vmem:[%s1978 + $0x20] sm:$0xff]
    %v1984 = vld [vmem:[%s1978 + $0x28] sm:$0xff]
    %v1985 = vld [vmem:[%s1978 + $0x30] sm:$0xff]
    %v1986 = vld [vmem:[%s1978 + $0x38] sm:$0xff]
    %v1987 = vld [vmem:[%s1978 + $0x40] sm:$0xff]
    %v1988 = vld [vmem:[%s1978 + $0x48] sm:$0xff]
    %v1989 = vld [vmem:[%s1978 + $0x50] sm:$0xff]
    %v1990 = vld [vmem:[%s1978 + $0x58] sm:$0xff]
    %v1991 = vld [vmem:[%s1978 + $0x60] sm:$0xff]
    %v1992 = vld [vmem:[%s1978 + $0x68] sm:$0xff]
    %v1993 = vld [vmem:[%s1978 + $0x70] sm:$0xff]
    %v1994 = vld [vmem:[%s1978 + $0x78] sm:$0xff]
    %v1995 = vld [vmem:[%s1978 + $0x80] sm:$0xff]
    %v1996 = vld [vmem:[%s1978 + $0x88] sm:$0x3]
    %v1998 = vsel %vm1664, %v1624, 0
    %v2001 = vsel %vm1689, %v1996, 0
    %2003 = vmatpush.msra.mxu0 %v1994
    %2004 = vmatpush.msra.mxu0 %v1993
    %2005 = vmatpush.msra.mxu0 %v1992
    %2006 = vmatpush.msra.mxu0 %v1991
    %2007 = vmatpush.msra.mxu0 %v1990
    %2008 = vmatpush.msra.mxu0 %v1989
    %2009 = vmatpush.msra.mxu0 %v1988
    %2010 = vmatpush.msra.mxu0 %v1987
    %2011 = vmatpush.msra.mxu0 %v1986
    %2012 = vmatpush.msra.mxu0 %v1985
    %2013 = vmatpush.msra.mxu0 %v1984
    %2014 = vmatpush.msra.mxu0 %v1983
    %2015 = vmatpush.msra.mxu0 %v1982
    %2016 = vmatpush.msra.mxu0 %v1981
    %2017 = vmatpush.msra.mxu0 %v1980
    %2018 = vmatpush.msra.mxu0 %v1979
    %2019 = vmatmul.f32.gmra.mxu0 %v1609
    %v2020 = vpop.f32.mrf.mxu0
    %v2021 = vadd.f32 0.0, %v2020
    %2022 = vmatmul.f32.gmra.mxu0 %v1611
    %v2023 = vpop.f32.mrf.mxu0
    %v2024 = vadd.f32 0.0, %v2023
    %2025 = vmatmul.f32.gmra.mxu0 %v1613
    %v2026 = vpop.f32.mrf.mxu0
    %v2027 = vadd.f32 0.0, %v2026
    %2028 = vmatmul.f32.gmra.mxu0 %v1615
    %v2029 = vpop.f32.mrf.mxu0
    %v2030 = vadd.f32 0.0, %v2029
    %2031 = vmatmul.f32.gmra.mxu0 %v1617
    %v2032 = vpop.f32.mrf.mxu0
    %v2033 = vadd.f32 0.0, %v2032
    %2034 = vmatmul.f32.gmra.mxu0 %v1619
    %v2035 = vpop.f32.mrf.mxu0
    %v2036 = vadd.f32 0.0, %v2035
    %2037 = vmatmul.f32.gmra.mxu0 %v1621
    %v2038 = vpop.f32.mrf.mxu0
    %v2039 = vadd.f32 0.0, %v2038
    %2040 = vmatmul.f32.gmra.mxu0 %v1623
    %v2041 = vpop.f32.mrf.mxu0
    %v2042 = vadd.f32 0.0, %v2041
    %2043 = vdwg.mxu0
    %2044 = vmatpush.msra.mxu0 0.0
    %2045 = vmatpush.msra.mxu0 0.0
    %2046 = vmatpush.msra.mxu0 0.0
    %2047 = vmatpush.msra.mxu0 0.0
    %2048 = vmatpush.msra.mxu0 0.0
    %2049 = vmatpush.msra.mxu0 0.0
    %2050 = vmatpush.msra.mxu0 0.0
    %2051 = vmatpush.msra.mxu0 0.0
    %2052 = vmatpush.msra.mxu0 0.0
    %2053 = vmatpush.msra.mxu0 0.0
    %2054 = vmatpush.msra.mxu0 0.0
    %2055 = vmatpush.msra.mxu0 0.0
    %2056 = vmatpush.msra.mxu0 0.0
    %2057 = vmatpush.msra.mxu0 0.0
    %2058 = vmatpush.msra.mxu0 %v2001
    %2059 = vmatpush.msra.mxu0 %v1995
    %2060 = vmatmul.f32.gmra.mxu0 %v1672
    %v2061 = vpop.f32.mrf.mxu0
    %v2062 = vadd.f32 %v2021, %v2061
    %2063 = vmatmul.f32.gmra.mxu0 %v1675
    %v2064 = vpop.f32.mrf.mxu0
    %v2065 = vadd.f32 %v2024, %v2064
    %2066 = vmatmul.f32.gmra.mxu0 %v1678
    %v2067 = vpop.f32.mrf.mxu0
    %v2068 = vadd.f32 %v2027, %v2067
    %2069 = vmatmul.f32.gmra.mxu0 %v1681
    %v2070 = vpop.f32.mrf.mxu0
    %v2071 = vadd.f32 %v2030, %v2070
    %2072 = vmatmul.f32.gmra.mxu0 %v1684
    %v2073 = vpop.f32.mrf.mxu0
    %v2074 = vadd.f32 %v2033, %v2073
    %2075 = vmatmul.f32.gmra.mxu0 %v1687
    %v2076 = vpop.f32.mrf.mxu0
    %v2077 = vadd.f32 %v2036, %v2076
    %2078 = vmatmul.f32.gmra.mxu0 %v1883
    %v2079 = vpop.f32.mrf.mxu0
    %v2080 = vadd.f32 %v2039, %v2079
    %2081 = vmatmul.f32.gmra.mxu0 %v1998
    %v2082 = vpop.f32.mrf.mxu0
    %v2083 = vadd.f32 %v2042, %v2082
    %2084 = vdwg.mxu0
    %v2085 = vadd.f32 %v1970, %v2062
    %v2086 = vadd.f32 %v1971, %v2065
    %v2087 = vadd.f32 %v1972, %v2068
    %v2088 = vadd.f32 %v1973, %v2071
    %v2089 = vadd.f32 %v1974, %v2074
    %v2090 = vadd.f32 %v1975, %v2077
    %v2091 = vadd.f32 %v1976, %v2080
    %v2092 = vadd.f32 %v1977, %v2083
    %s2093 = scalar_lea.vmem [#allocation8], 576
    %v2094 = vld [vmem:[%s2093] sm:$0xff]
    %v2095 = vld [vmem:[%s2093 + $0x8] sm:$0xff]
    %v2096 = vld [vmem:[%s2093 + $0x10] sm:$0xff]
    %v2097 = vld [vmem:[%s2093 + $0x18] sm:$0xff]
    %v2098 = vld [vmem:[%s2093 + $0x20] sm:$0xff]
    %v2099 = vld [vmem:[%s2093 + $0x28] sm:$0xff]
    %v2100 = vld [vmem:[%s2093 + $0x30] sm:$0xff]
    %v2101 = vld [vmem:[%s2093 + $0x38] sm:$0xff]
    %v2102 = vld [vmem:[%s2093 + $0x40] sm:$0xff]
    %v2103 = vld [vmem:[%s2093 + $0x48] sm:$0xff]
    %v2104 = vld [vmem:[%s2093 + $0x50] sm:$0xff]
    %v2105 = vld [vmem:[%s2093 + $0x58] sm:$0xff]
    %v2106 = vld [vmem:[%s2093 + $0x60] sm:$0xff]
    %v2107 = vld [vmem:[%s2093 + $0x68] sm:$0xff]
    %v2108 = vld [vmem:[%s2093 + $0x70] sm:$0xff]
    %v2109 = vld [vmem:[%s2093 + $0x78] sm:$0xff]
    %v2110 = vld [vmem:[%s2093 + $0x80] sm:$0xff]
    %v2111 = vld [vmem:[%s2093 + $0x88] sm:$0x3]
    %v2113 = vsel %vm1664, %v1626, 0
    %v2116 = vsel %vm1689, %v2111, 0
    %2118 = vmatpush.msra.mxu0 %v2109
    %2119 = vmatpush.msra.mxu0 %v2108
    %2120 = vmatpush.msra.mxu0 %v2107
    %2121 = vmatpush.msra.mxu0 %v2106
    %2122 = vmatpush.msra.mxu0 %v2105
    %2123 = vmatpush.msra.mxu0 %v2104
    %2124 = vmatpush.msra.mxu0 %v2103
    %2125 = vmatpush.msra.mxu0 %v2102
    %2126 = vmatpush.msra.mxu0 %v2101
    %2127 = vmatpush.msra.mxu0 %v2100
    %2128 = vmatpush.msra.mxu0 %v2099
    %2129 = vmatpush.msra.mxu0 %v2098
    %2130 = vmatpush.msra.mxu0 %v2097
    %2131 = vmatpush.msra.mxu0 %v2096
    %2132 = vmatpush.msra.mxu0 %v2095
    %2133 = vmatpush.msra.mxu0 %v2094
    %2134 = vmatmul.f32.gmra.mxu0 %v1611
    %v2135 = vpop.f32.mrf.mxu0
    %v2136 = vadd.f32 0.0, %v2135
    %2137 = vmatmul.f32.gmra.mxu0 %v1613
    %v2138 = vpop.f32.mrf.mxu0
    %v2139 = vadd.f32 0.0, %v2138
    %2140 = vmatmul.f32.gmra.mxu0 %v1615
    %v2141 = vpop.f32.mrf.mxu0
    %v2142 = vadd.f32 0.0, %v2141
    %2143 = vmatmul.f32.gmra.mxu0 %v1617
    %v2144 = vpop.f32.mrf.mxu0
    %v2145 = vadd.f32 0.0, %v2144
    %2146 = vmatmul.f32.gmra.mxu0 %v1619
    %v2147 = vpop.f32.mrf.mxu0
    %v2148 = vadd.f32 0.0, %v2147
    %2149 = vmatmul.f32.gmra.mxu0 %v1621
    %v2150 = vpop.f32.mrf.mxu0
    %v2151 = vadd.f32 0.0, %v2150
    %2152 = vmatmul.f32.gmra.mxu0 %v1623
    %v2153 = vpop.f32.mrf.mxu0
    %v2154 = vadd.f32 0.0, %v2153
    %2155 = vmatmul.f32.gmra.mxu0 %v1625
    %v2156 = vpop.f32.mrf.mxu0
    %v2157 = vadd.f32 0.0, %v2156
    %2158 = vdwg.mxu0
    %2159 = vmatpush.msra.mxu0 0.0
    %2160 = vmatpush.msra.mxu0 0.0
    %2161 = vmatpush.msra.mxu0 0.0
    %2162 = vmatpush.msra.mxu0 0.0
    %2163 = vmatpush.msra.mxu0 0.0
    %2164 = vmatpush.msra.mxu0 0.0
    %2165 = vmatpush.msra.mxu0 0.0
    %2166 = vmatpush.msra.mxu0 0.0
    %2167 = vmatpush.msra.mxu0 0.0
    %2168 = vmatpush.msra.mxu0 0.0
    %2169 = vmatpush.msra.mxu0 0.0
    %2170 = vmatpush.msra.mxu0 0.0
    %2171 = vmatpush.msra.mxu0 0.0
    %2172 = vmatpush.msra.mxu0 0.0
    %2173 = vmatpush.msra.mxu0 %v2116
    %2174 = vmatpush.msra.mxu0 %v2110
    %2175 = vmatmul.f32.gmra.mxu0 %v1675
    %v2176 = vpop.f32.mrf.mxu0
    %v2177 = vadd.f32 %v2136, %v2176
    %2178 = vmatmul.f32.gmra.mxu0 %v1678
    %v2179 = vpop.f32.mrf.mxu0
    %v2180 = vadd.f32 %v2139, %v2179
    %2181 = vmatmul.f32.gmra.mxu0 %v1681
    %v2182 = vpop.f32.mrf.mxu0
    %v2183 = vadd.f32 %v2142, %v2182
    %2184 = vmatmul.f32.gmra.mxu0 %v1684
    %v2185 = vpop.f32.mrf.mxu0
    %v2186 = vadd.f32 %v2145, %v2185
    %2187 = vmatmul.f32.gmra.mxu0 %v1687
    %v2188 = vpop.f32.mrf.mxu0
    %v2189 = vadd.f32 %v2148, %v2188
    %2190 = vmatmul.f32.gmra.mxu0 %v1883
    %v2191 = vpop.f32.mrf.mxu0
    %v2192 = vadd.f32 %v2151, %v2191
    %2193 = vmatmul.f32.gmra.mxu0 %v1998
    %v2194 = vpop.f32.mrf.mxu0
    %v2195 = vadd.f32 %v2154, %v2194
    %2196 = vmatmul.f32.gmra.mxu0 %v2113
    %v2197 = vpop.f32.mrf.mxu0
    %v2198 = vadd.f32 %v2157, %v2197
    %2199 = vdwg.mxu0
    %v2200 = vadd.f32 %v2085, %v2177
    %v2201 = vadd.f32 %v2086, %v2180
    %v2202 = vadd.f32 %v2087, %v2183
    %v2203 = vadd.f32 %v2088, %v2186
    %v2204 = vadd.f32 %v2089, %v2189
    %v2205 = vadd.f32 %v2090, %v2192
    %v2206 = vadd.f32 %v2091, %v2195
    %v2207 = vadd.f32 %v2092, %v2198
    %v2208 = vld [vmem:[%s4] sm:$0x1]
    %v2210 = vperm.slane %v2208, 0
    %v2212 = vadd.f32 %v2200, %v2210
    %v2213 = vadd.f32 %v2201, %v2210
    %v2214 = vadd.f32 %v2202, %v2210
    %v2215 = vadd.f32 %v2203, %v2210
    %v2216 = vadd.f32 %v2204, %v2210
    %v2217 = vadd.f32 %v2205, %v2210
    %v2218 = vadd.f32 %v2206, %v2210
    %v2219 = vadd.f32 %v2207, %v2210
    %v2220 = vmax.f32 %v2212, 0.0
    %v2221 = vmax.f32 %v2213, 0.0
    %v2222 = vmax.f32 %v2214, 0.0
    %v2223 = vmax.f32 %v2215, 0.0
    %v2224 = vmax.f32 %v2216, 0.0
    %v2225 = vmax.f32 %v2217, 0.0
    %v2226 = vmax.f32 %v2218, 0.0
    %v2227 = vmax.f32 %v2219, 0.0
    %v2228 = vmax.f32 %v2220, %v2221
    %v2229 = vmax.f32 %v2222, %v2223
    %v2230 = vmax.f32 %v2224, %v2225
    %v2231 = vmax.f32 %v2226, %v2227
    %2236 = vrot.lane.b32.xlu0 %v2228, 112
    %v2237 = vpop.permute.xlu0 %2236
    %2238 = vrot.lane.b32.xlu0 %v2229, 112
    %v2239 = vpop.permute.xlu0 %2238
    %2240 = vrot.lane.b32.xlu0 %v2230, 112
    %v2241 = vpop.permute.xlu0 %2240
    %2242 = vrot.lane.b32.xlu0 %v2231, 112
    %v2243 = vpop.permute.xlu0 %2242
    %v2248 = vmax.f32 %v2228, %v2237
    %v2249 = vmax.f32 %v2229, %v2239
    %v2250 = vmax.f32 %v2230, %v2241
    %v2251 = vmax.f32 %v2231, %v2243
    %2253 = vrot.lane.b32.xlu0 %v2249, 112
    %v2254 = vpop.permute.xlu0 %2253
    %2257 = vrot.lane.b32.xlu0 %v2250, 96
    %v2258 = vpop.permute.xlu0 %2257
    %2261 = vrot.lane.b32.xlu0 %v2251, 80
    %v2262 = vpop.permute.xlu0 %2261
    %vm2264 = vcmask 916480
    %v2265 = vsel %vm2264, %v2248, %v2254
    %vm2266 = vcmask 785408
    %v2267 = vsel %vm2266, %v2254, %v2258
    %vm2268 = vcmask 654336
    %v2269 = vsel %vm2268, %v2258, %v2262
    %v2270 = vld [vmem:[#allocation10] sm:$0xff]
    %v2271 = vld [vmem:[#allocation10 + $0x8] sm:$0xff]
    %v2272 = vld [vmem:[#allocation10 + $0x10] sm:$0xff]
    %v2273 = vld [vmem:[#allocation10 + $0x18] sm:$0xff]
    %v2274 = vld [vmem:[#allocation10 + $0x20] sm:$0xff]
    %v2275 = vld [vmem:[#allocation10 + $0x28] sm:$0xff]
    %v2276 = vld [vmem:[#allocation10 + $0x30] sm:$0xff]
    %v2277 = vld [vmem:[#allocation10 + $0x38] sm:$0xff]
    %v2278 = vld [vmem:[#allocation10 + $0x40] sm:$0xff]
    %v2279 = vld [vmem:[#allocation10 + $0x48] sm:$0xff]
    %v2280 = vld [vmem:[#allocation10 + $0x50] sm:$0xff]
    %v2281 = vld [vmem:[#allocation10 + $0x58] sm:$0xff]
    %v2282 = vld [vmem:[#allocation10 + $0x60] sm:$0xff]
    %v2283 = vld [vmem:[#allocation10 + $0x68] sm:$0xff]
    %v2284 = vld [vmem:[#allocation10 + $0x70] sm:$0xff]
    %v2285 = vld [vmem:[#allocation10 + $0x78] sm:$0xff]
    %v2286 = vld [vmem:[#allocation10 + $0x80] sm:$0xff]
    %v2287 = vld [vmem:[#allocation10 + $0x88] sm:$0xff]
    %v2288 = vld [vmem:[#allocation10 + $0x90] sm:$0xff]
    %v2289 = vld [vmem:[#allocation10 + $0x98] sm:$0xff]
    %v2290 = vld [vmem:[#allocation10 + $0xa0] sm:$0xff]
    %v2291 = vld [vmem:[#allocation10 + $0xa8] sm:$0xff]
    %v2292 = vld [vmem:[#allocation10 + $0xb0] sm:$0xff]
    %v2293 = vld [vmem:[#allocation10 + $0xb8] sm:$0xff]
    %v2294 = vld [vmem:[#allocation10 + $0xc0] sm:$0xff]
    %v2295 = vld [vmem:[#allocation10 + $0xc8] sm:$0xff]
    %v2296 = vld [vmem:[#allocation10 + $0xd0] sm:$0xff]
    %v2297 = vld [vmem:[#allocation10 + $0xd8] sm:$0xff]
    %v2298 = vld [vmem:[#allocation10 + $0xe0] sm:$0xff]
    %v2299 = vld [vmem:[#allocation10 + $0xe8] sm:$0xff]
    %v2300 = vld [vmem:[#allocation10 + $0xf0] sm:$0xff]
    %v2301 = vld [vmem:[#allocation10 + $0xf8] sm:$0xff]
    %v2302 = vld [vmem:[#allocation10 + $0x100] sm:$0xff]
    %v2303 = vld [vmem:[#allocation10 + $0x108] sm:$0xff]
    %v2304 = vld [vmem:[#allocation10 + $0x110] sm:$0xff]
    %v2305 = vld [vmem:[#allocation10 + $0x118] sm:$0xff]
    %v2306 = vld [vmem:[#allocation10 + $0x120] sm:$0xff]
    %v2307 = vld [vmem:[#allocation10 + $0x128] sm:$0xff]
    %v2308 = vld [vmem:[#allocation10 + $0x130] sm:$0xff]
    %v2309 = vld [vmem:[#allocation10 + $0x138] sm:$0xff]
    %v2310 = vld [vmem:[#allocation10 + $0x140] sm:$0xff]
    %v2311 = vld [vmem:[#allocation10 + $0x148] sm:$0xff]
    %v2312 = vld [vmem:[#allocation10 + $0x150] sm:$0xff]
    %v2313 = vld [vmem:[#allocation10 + $0x158] sm:$0xff]
    %v2314 = vld [vmem:[#allocation10 + $0x160] sm:$0xff]
    %v2315 = vld [vmem:[#allocation10 + $0x168] sm:$0xff]
    %v2316 = vld [vmem:[#allocation10 + $0x170] sm:$0xff]
    %v2317 = vld [vmem:[#allocation10 + $0x178] sm:$0xff]
    %v2318 = vld [vmem:[#allocation10 + $0x180] sm:$0xff]
    %v2319 = vld [vmem:[#allocation10 + $0x188] sm:$0xff]
    %v2320 = vld [vmem:[#allocation10 + $0x190] sm:$0xff]
    %v2321 = vld [vmem:[#allocation10 + $0x198] sm:$0xff]
    %v2322 = vld [vmem:[#allocation10 + $0x1a0] sm:$0xff]
    %v2323 = vld [vmem:[#allocation10 + $0x1a8] sm:$0xff]
    %v2324 = vld [vmem:[#allocation10 + $0x1b0] sm:$0xff]
    %v2325 = vld [vmem:[#allocation10 + $0x1b8] sm:$0xff]
    %v2326 = vld [vmem:[%s6] sm:$0x1]
    %v2328 = vperm.slane %v2326, 0
    %vm2330 = vcmask 523264
    %v2331 = vsel %vm2330, %v2262, 0
    %2333 = vmatpush.msra.mxu0 %v2285
    %2334 = vmatpush.msra.mxu0 %v2284
    %2335 = vmatpush.msra.mxu0 %v2283
    %2336 = vmatpush.msra.mxu0 %v2282
    %2337 = vmatpush.msra.mxu0 %v2281
    %2338 = vmatpush.msra.mxu0 %v2280
    %2339 = vmatpush.msra.mxu0 %v2279
    %2340 = vmatpush.msra.mxu0 %v2278
    %2341 = vmatpush.msra.mxu0 %v2277
    %2342 = vmatpush.msra.mxu0 %v2276
    %2343 = vmatpush.msra.mxu0 %v2275
    %2344 = vmatpush.msra.mxu0 %v2274
    %2345 = vmatpush.msra.mxu0 %v2273
    %2346 = vmatpush.msra.mxu0 %v2272
    %2347 = vmatpush.msra.mxu0 %v2271
    %2348 = vmatpush.msra.mxu0 %v2270
    %2349 = vmatmul.f32.gmra.mxu0 %v2265
    %v2350 = vpop.f32.mrf.mxu0
    %v2351 = vadd.f32 %v2328, %v2350
    %2352 = vdwg.mxu0
    %2353 = vmatpush.msra.mxu0 %v2301
    %2354 = vmatpush.msra.mxu0 %v2300
    %2355 = vmatpush.msra.mxu0 %v2299
    %2356 = vmatpush.msra.mxu0 %v2298
    %2357 = vmatpush.msra.mxu0 %v2297
    %2358 = vmatpush.msra.mxu0 %v2296
    %2359 = vmatpush.msra.mxu0 %v2295
    %2360 = vmatpush.msra.mxu0 %v2294
    %2361 = vmatpush.msra.mxu0 %v2293
    %2362 = vmatpush.msra.mxu0 %v2292
    %2363 = vmatpush.msra.mxu0 %v2291
    %2364 = vmatpush.msra.mxu0 %v2290
    %2365 = vmatpush.msra.mxu0 %v2289
    %2366 = vmatpush.msra.mxu0 %v2288
    %2367 = vmatpush.msra.mxu0 %v2287
    %2368 = vmatpush.msra.mxu0 %v2286
    %2369 = vmatmul.f32.gmra.mxu0 %v2267
    %v2370 = vpop.f32.mrf.mxu0
    %v2371 = vadd.f32 %v2351, %v2370
    %2372 = vdwg.mxu0
    %2373 = vmatpush.msra.mxu0 %v2317
    %2374 = vmatpush.msra.mxu0 %v2316
    %2375 = vmatpush.msra.mxu0 %v2315
    %2376 = vmatpush.msra.mxu0 %v2314
    %2377 = vmatpush.msra.mxu0 %v2313
    %2378 = vmatpush.msra.mxu0 %v2312
    %2379 = vmatpush.msra.mxu0 %v2311
    %2380 = vmatpush.msra.mxu0 %v2310
    %2381 = vmatpush.msra.mxu0 %v2309
    %2382 = vmatpush.msra.mxu0 %v2308
    %2383 = vmatpush.msra.mxu0 %v2307
    %2384 = vmatpush.msra.mxu0 %v2306
    %2385 = vmatpush.msra.mxu0 %v2305
    %2386 = vmatpush.msra.mxu0 %v2304
    %2387 = vmatpush.msra.mxu0 %v2303
    %2388 = vmatpush.msra.mxu0 %v2302
    %2389 = vmatmul.f32.gmra.mxu0 %v2269
    %v2390 = vpop.f32.mrf.mxu0
    %v2391 = vadd.f32 %v2371, %v2390
    %2392 = vdwg.mxu0
    %2393 = vmatpush.msra.mxu0 0.0
    %2394 = vmatpush.msra.mxu0 0.0
    %2395 = vmatpush.msra.mxu0 0.0
    %2396 = vmatpush.msra.mxu0 0.0
    %2397 = vmatpush.msra.mxu0 0.0
    %2398 = vmatpush.msra.mxu0 0.0
    %2399 = vmatpush.msra.mxu0 0.0
    %2400 = vmatpush.msra.mxu0 0.0
    %2401 = vmatpush.msra.mxu0 %v2325
    %2402 = vmatpush.msra.mxu0 %v2324
    %2403 = vmatpush.msra.mxu0 %v2323
    %2404 = vmatpush.msra.mxu0 %v2322
    %2405 = vmatpush.msra.mxu0 %v2321
    %2406 = vmatpush.msra.mxu0 %v2320
    %2407 = vmatpush.msra.mxu0 %v2319
    %2408 = vmatpush.msra.mxu0 %v2318
    %2409 = vmatmul.f32.gmra.mxu0 %v2331
    %v2410 = vpop.f32.mrf.mxu0
    %v2411 = vadd.f32 %v2391, %v2410
    %2412 = vdwg.mxu0
    %v2413 = vmax.f32 %v2411, 0.0
    %v2414 = vld [vmem:[#allocation11] sm:$0xff]
    %v2415 = vld [vmem:[#allocation11 + $0x8] sm:$0xff]
    %v2416 = vld [vmem:[#allocation11 + $0x10] sm:$0xff]
    %v2417 = vld [vmem:[#allocation11 + $0x18] sm:$0xff]
    %v2418 = vld [vmem:[#allocation11 + $0x20] sm:$0xff]
    %v2419 = vld [vmem:[#allocation11 + $0x28] sm:$0xff]
    %v2420 = vld [vmem:[#allocation11 + $0x30] sm:$0xff]
    %v2421 = vld [vmem:[#allocation11 + $0x38] sm:$0xff]
    %v2422 = vld [vmem:[#allocation11 + $0x40] sm:$0xff]
    %v2423 = vld [vmem:[#allocation11 + $0x48] sm:$0xff]
    %v2424 = vld [vmem:[#allocation11 + $0x50] sm:$0xff]
    %v2425 = vld [vmem:[#allocation11 + $0x58] sm:$0xff]
    %v2426 = vld [vmem:[#allocation11 + $0x60] sm:$0xff]
    %v2427 = vld [vmem:[#allocation11 + $0x68] sm:$0xff]
    %v2428 = vld [vmem:[#allocation11 + $0x70] sm:$0xff]
    %v2429 = vld [vmem:[#allocation11 + $0x78] sm:$0xff]
    %v2430 = vld [vmem:[%s8] sm:$0x1]
    %v2432 = vperm.slane %v2430, 0
    %2434 = vmatpush.msra.mxu0 %v2429
    %2435 = vmatpush.msra.mxu0 %v2428
    %2436 = vmatpush.msra.mxu0 %v2427
    %2437 = vmatpush.msra.mxu0 %v2426
    %2438 = vmatpush.msra.mxu0 %v2425
    %2439 = vmatpush.msra.mxu0 %v2424
    %2440 = vmatpush.msra.mxu0 %v2423
    %2441 = vmatpush.msra.mxu0 %v2422
    %2442 = vmatpush.msra.mxu0 %v2421
    %2443 = vmatpush.msra.mxu0 %v2420
    %2444 = vmatpush.msra.mxu0 %v2419
    %2445 = vmatpush.msra.mxu0 %v2418
    %2446 = vmatpush.msra.mxu0 %v2417
    %2447 = vmatpush.msra.mxu0 %v2416
    %2448 = vmatpush.msra.mxu0 %v2415
    %2449 = vmatpush.msra.mxu0 %v2414
    %2450 = vmatmul.f32.gmra.mxu0 %v2413
    %v2451 = vpop.f32.mrf.mxu0
    %v2452 = vadd.f32 %v2432, %v2451
    %2453 = vdwg.mxu0
    %v2454 = vmax.f32 %v2452, 0.0
    %v2455 = vld [vmem:[#allocation13] sm:$0xff]
    %v2456 = vld [vmem:[#allocation13 + $0x8] sm:$0xff]
    %v2457 = vld [vmem:[#allocation13 + $0x10] sm:$0xff]
    %v2458 = vld [vmem:[#allocation13 + $0x18] sm:$0xff]
    %v2459 = vld [vmem:[#allocation13 + $0x20] sm:$0xff]
    %v2460 = vld [vmem:[#allocation13 + $0x28] sm:$0xff]
    %v2461 = vld [vmem:[#allocation13 + $0x30] sm:$0xff]
    %v2462 = vld [vmem:[#allocation13 + $0x38] sm:$0xff]
    %v2463 = vld [vmem:[#allocation13 + $0x40] sm:$0xff]
    %v2464 = vld [vmem:[#allocation13 + $0x48] sm:$0xff]
    %v2465 = vld [vmem:[#allocation13 + $0x50] sm:$0xff]
    %v2466 = vld [vmem:[#allocation13 + $0x58] sm:$0xff]
    %v2467 = vld [vmem:[#allocation13 + $0x60] sm:$0xff]
    %v2468 = vld [vmem:[#allocation13 + $0x68] sm:$0xff]
    %v2469 = vld [vmem:[#allocation13 + $0x70] sm:$0xff]
    %v2470 = vld [vmem:[#allocation13 + $0x78] sm:$0xff]
    %v2471 = vld [vmem:[%s10] sm:$0x1]
    %v2473 = vperm.slane %v2471, 0
    %2475 = vmatpush.msra.mxu0 %v2470
    %2476 = vmatpush.msra.mxu0 %v2469
    %2477 = vmatpush.msra.mxu0 %v2468
    %2478 = vmatpush.msra.mxu0 %v2467
    %2479 = vmatpush.msra.mxu0 %v2466
    %2480 = vmatpush.msra.mxu0 %v2465
    %2481 = vmatpush.msra.mxu0 %v2464
    %2482 = vmatpush.msra.mxu0 %v2463
    %2483 = vmatpush.msra.mxu0 %v2462
    %2484 = vmatpush.msra.mxu0 %v2461
    %2485 = vmatpush.msra.mxu0 %v2460
    %2486 = vmatpush.msra.mxu0 %v2459
    %2487 = vmatpush.msra.mxu0 %v2458
    %2488 = vmatpush.msra.mxu0 %v2457
    %2489 = vmatpush.msra.mxu0 %v2456
    %2490 = vmatpush.msra.mxu0 %v2455
    %2491 = vmatmul.f32.gmra.mxu0 %v2454
    %v2492 = vpop.f32.mrf.mxu0
    %v2493 = vadd.f32 %v2473, %v2492
    %2494 = vdwg.mxu0
    %2495 = vst [vmem:[#allocation14] sm:$0xff] %v2493
    // Predicated region
    $region74: #{tpu_custom_call.1} parent=1 // pred_check
      _
    $region75: #{tpu_custom_call.1} parent=1 // pred_check_branch
      %2497 = sbr.rel (0) target = $region77
    $region76: #{tpu_custom_call.1} parent=1 // pred_region
      %2499 = vsyncadd [#allocation4], 0
      %s2501 = sshll.u32 [#allocation14], 4
      %s2502 = int_to_ptr.vmem [resolvable:$true] %s2501
      %s2503 = sshll.u32 %s11, 4
      %s2504 = int_to_ptr.hbm [resolvable:$true] %s2503
      %2506 = dma.vmem_to_hbm [thread:$0]  %s2502, 128, %s2504, [#allocation4]
    $region77: #{tpu_custom_call.1} parent=1 // pred_fallthru
      _
    // Predicated region
    $region78: #{tpu_custom_call.1} parent=1 // pred_check
      _
    $region79: #{tpu_custom_call.1} parent=1 // pred_check_branch
      %2508 = sbr.rel (0) target = $region81
    $region80: #{tpu_custom_call.1} parent=1 // pred_region
      %2510 = dma.done [#allocation4], 128
    $region81: #{tpu_custom_call.1} parent=1 // pred_fallthru
      _
    %2511 = vsyncpa [#allocation3], 1
    %2512 = vsyncpa [#allocation6], 1
    %2513 = vsyncpa [#allocation9], 1
    %2514 = vsyncpa [#allocation12], 1
    %2515 = vsyncpa [#allocation4], 1

</llo_original>
